<compile_context>
chip_gen: v6e
topology: v6e:2x2x1
jax: 0.10.0
libtpu: 0.0.40
codegen_flags: <defaults>
</compile_context>

<pallas_src>
import functools

import jax
import jax.numpy as jnp
import numpy as np
from jax.experimental import pallas as pl
from jax.experimental.pallas import tpu as pltpu

BN_EPS = 1e-5  # PyTorch BatchNorm2d default eps


def _round_up(x, m):
    return (x + m - 1) // m * m


def _conv_bn_relu_kernel(x_ref, w_ref, gb_ref, o_ref, p_scr, *,
                         N, CP, Hp, Wp, Hout, Wout, KH, KW, MK):
    """Conv2d(kxk, stride 1) + BatchNorm2d(train) + ReLU, single grid point.

    x_ref : [CP, XL]        padded input, channel-major; lane = flat (n, h, w)
    w_ref : [Cout, KH*KW*CP] conv weights, column = (kh*KW + kw)*CP + ci
    gb_ref: [Cout, 2]        packed per-channel BN params (gamma, beta)
    o_ref : [Cout, MK]       lane-dense output, lane = flat (n, h, w) over (N,Hp,Wp)
    p_scr : [KH*KW*CP, MK]   VMEM scratch holding the im2col patch slab
    """
    HpWp = Hp * Wp

    # ---- In-kernel im2col: KH*KW static shifted lane-slices of the (tiny)
    # input, stored as aligned 8-sublane blocks into the patch scratch.
    x = x_ref[...]                                              # [CP, XL]
    for kh in range(KH):
        for kw in range(KW):
            g = kh * KW + kw
            off = kh * Wp + kw
            p_scr[pl.ds(g * CP, CP), :] = x[:, off:off + MK]

    # ---- Conv as ONE MXU matmul with f32 accumulation (no conv bias: it is
    # cancelled exactly by the BN mean subtraction below).
    acc = jnp.dot(w_ref[...], p_scr[...],
                  preferred_element_type=jnp.float32)           # [Cout, MK]

    # ---- Column-validity mask: lane m encodes (n, h, w) over (N, Hp, Wp);
    # only h < Hout and w < Wout are real conv outputs.  Float floor-division
    # of small exact integers avoids integer div/mod on the VPU.
    lane = jax.lax.broadcasted_iota(jnp.int32, (1, MK), 1).astype(jnp.float32)
    rem = lane - jnp.floor(lane / float(HpWp)) * float(HpWp)    # m mod (Hp*Wp)
    wcol = rem - jnp.floor(rem / float(Wp)) * float(Wp)         # ... mod Wp
    valid = ((lane < float(N * HpWp))
             & (rem < float(Hout * Wp))                          # h < Hout
             & (wcol < float(Wout)))                             # w < Wout

    # ---- BatchNorm2d training-mode stats over the N*Hout*Wout valid columns
    # (two-pass mean / centered variance for numerical safety; divisor is the
    # TRUE element count, not the padded lane width).
    inv_cnt = 1.0 / float(N * Hout * Wout)
    accv = jnp.where(valid, acc, 0.0)
    mean = jnp.sum(accv, axis=1, keepdims=True) * inv_cnt        # [Cout, 1]
    d = jnp.where(valid, acc - mean, 0.0)
    var = jnp.sum(d * d, axis=1, keepdims=True) * inv_cnt        # [Cout, 1]
    inv = jax.lax.rsqrt(var + BN_EPS)

    # Fold BN affine into one per-channel scale/shift, then ReLU.
    gb = gb_ref[...]                                             # [Cout, 2]
    scale = inv * gb[:, 0:1]                                     # gamma * inv_std
    shift = gb[:, 1:2] - mean * scale                            # beta - mean*scale
    o_ref[...] = jnp.maximum(acc * scale + shift, 0.0)


def layer_forward(x_nchw, w_oihw, b, gamma, beta, padding=1):
    """Conv2d(k, s=1, p=padding) + BatchNorm2d(train) + ReLU via one Pallas kernel.

    `b` (conv bias) is accepted for API parity but unused: training-mode BN
    subtracts the per-channel batch mean, which cancels the bias exactly.
    """
    del b
    N, Cin, H, W = x_nchw.shape
    Cout, _, KH, KW = w_oihw.shape
    Hp, Wp = H + 2 * padding, W + 2 * padding
    Hout, Wout = Hp - KH + 1, Wp - KW + 1
    HpWp = Hp * Wp
    L = N * HpWp

    CP = _round_up(Cin, 8)          # channel rows padded to one sublane tile
    # Kernel output lane width: smallest multiple of 128 covering every valid
    # flattened (n, h<Hout, w<Wout) index -> fully unmasked lane-dense stores.
    MK = _round_up((N - 1) * HpWp + (Hout - 1) * Wp + Wout, 128)
    max_off = (KH - 1) * Wp + (KW - 1)
    XL = _round_up(max_off + MK, 128)   # input lane width incl. shift slack

    # ---- XLA-side glue: pad + channel-major flatten (tiny, no im2col blowup).
    x = x_nchw.astype(jnp.float32)
    x_pad = jnp.pad(x, ((0, 0), (0, 0), (padding, padding), (padding, padding)))
    x_cn = jnp.transpose(x_pad, (1, 0, 2, 3)).reshape(Cin, L)        # [Cin, L]
    x_in = jnp.pad(x_cn, ((0, CP - Cin), (0, XL - L)))               # [CP, XL]

    # Weights: [Cout, Cin, KH, KW] -> [Cout, KH, KW, CP] -> [Cout, KH*KW*CP]
    w_t = jnp.transpose(w_oihw.astype(jnp.float32), (0, 2, 3, 1))
    w_t = jnp.pad(w_t, ((0, 0), (0, 0), (0, 0), (0, CP - Cin)))
    w2 = w_t.reshape(Cout, KH * KW * CP)

    # gamma/beta packed into a single small operand.
    gb = jnp.stack([gamma.astype(jnp.float32), beta.astype(jnp.float32)], axis=1)

    kernel = functools.partial(
        _conv_bn_relu_kernel, N=N, CP=CP, Hp=Hp, Wp=Wp,
        Hout=Hout, Wout=Wout, KH=KH, KW=KW, MK=MK)

    out2d = pl.pallas_call(
        kernel,
        out_shape=jax.ShapeDtypeStruct((Cout, MK), jnp.float32),
        in_specs=[pl.BlockSpec(memory_space=pltpu.MemorySpace.VMEM)] * 3,
        out_specs=pl.BlockSpec(memory_space=pltpu.MemorySpace.VMEM),
        scratch_shapes=[pltpu.VMEM((KH * KW * CP, MK), jnp.float32)],
    )(x_in, w2, gb)

    # Lane-dense [Cout, MK] -> NCHW.  (Could be skipped entirely if the next
    # layer consumes channel-major output directly.)
    if MK >= L:
        out_l = out2d[:, :L]
    else:
        out_l = jnp.pad(out2d, ((0, 0), (0, L - MK)))
    out4 = out_l.reshape(Cout, N, Hp, Wp)[:, :, :Hout, :Wout]
    return jnp.transpose(out4, (1, 0, 2, 3))


def layer_forward_ref(x_nchw, w_oihw, b, gamma, beta, padding=1):
    """Pure-JAX reference (same semantics, WITH conv bias) for correctness."""
    out = jax.lax.conv_general_dilated(
        x_nchw, w_oihw, window_strides=(1, 1),
        padding=[(padding, padding), (padding, padding)],
        dimension_numbers=('NCHW', 'OIHW', 'NCHW'))
    out = out + b.reshape(1, -1, 1, 1)
    mean = jnp.mean(out, axis=(0, 2, 3), keepdims=True)
    var = jnp.mean((out - mean) ** 2, axis=(0, 2, 3), keepdims=True)
    out = (out - mean) * jax.lax.rsqrt(var + BN_EPS)
    out = out * gamma.reshape(1, -1, 1, 1) + beta.reshape(1, -1, 1, 1)
    return jnp.maximum(out, 0.0)


if __name__ == "__main__":
    # Small shapes consistent with the module: N=2, Cin=4, Cout=8, H=W=16, k=5.
    N, Cin, Cout, H, W, Kk = 2, 4, 8, 16, 16, 5

    key = jax.random.PRNGKey(0)
    kx, kw, kb, kg, kbe = jax.random.split(key, 5)

    x = jax.random.normal(kx, (N, Cin, H, W), dtype=jnp.float32)
    conv_w = jax.random.normal(kw, (Cout, Cin, Kk, Kk), dtype=jnp.float32) * 0.1
    conv_b = jax.random.normal(kb, (Cout,), dtype=jnp.float32) * 0.1
    bn_gamma = 1.0 + 0.1 * jax.random.normal(kg, (Cout,), dtype=jnp.float32)
    bn_beta = 0.1 * jax.random.normal(kbe, (Cout,), dtype=jnp.float32)

    out = layer_forward(x, conv_w, conv_b, bn_gamma, bn_beta, padding=1)
    out = jax.block_until_ready(out)

    ref = jax.block_until_ready(
        layer_forward_ref(x, conv_w, conv_b, bn_gamma, bn_beta, padding=1))

    assert out.shape == (N, Cout, H - 2, W - 2), out.shape
    np.testing.assert_allclose(np.asarray(out), np.asarray(ref), rtol=1e-4, atol=1e-4)
    print("KERNEL_OK")
</pallas_src>

<mosaic_0001>
module attributes {stable_mosaic.version = 11 : i64} {
  func.func @_conv_bn_relu_kernel(%arg0: memref<8x768xf32, #tpu.memory_space<vmem>>, %arg1: memref<8x200xf32, #tpu.memory_space<vmem>>, %arg2: memref<8x2xf32, #tpu.memory_space<vmem>>, %arg3: memref<8x640xf32, #tpu.memory_space<vmem>>, %arg4: memref<200x640xf32, #tpu.memory_space<vmem>>) attributes {dimension_semantics = [], scalar_prefetch = 0 : i64, scratch_operands = 1 : i64, tpu.core_type = #tpu.core_type<tc>} {
    %c0 = arith.constant 0 : index
    %c0_0 = arith.constant 0 : index
    %0 = vector.load %arg0[%c0, %c0_0] : memref<8x768xf32, #tpu.memory_space<vmem>>, vector<8x768xf32>
    %1 = vector.extract_strided_slice %0 {offsets = [0, 0], sizes = [8, 640], strides = [1, 1]} : vector<8x768xf32> to vector<8x640xf32>
    %c0_1 = arith.constant 0 : index
    %c0_2 = arith.constant 0 : index
    %2 = vector.load %arg4[%c0_1, %c0_2] : memref<200x640xf32, #tpu.memory_space<vmem>>, vector<8x640xf32>
    tpu.vector_store %arg4[%c0_1, %c0_2], %1 {strides = array<i32>} : memref<200x640xf32, #tpu.memory_space<vmem>>, vector<8x640xf32>,
    %3 = vector.extract_strided_slice %0 {offsets = [0, 1], sizes = [8, 640], strides = [1, 1]} : vector<8x768xf32> to vector<8x640xf32>
    %c8 = arith.constant 8 : index
    %c0_3 = arith.constant 0 : index
    %4 = vector.load %arg4[%c8, %c0_3] : memref<200x640xf32, #tpu.memory_space<vmem>>, vector<8x640xf32>
    tpu.vector_store %arg4[%c8, %c0_3], %3 {strides = array<i32>} : memref<200x640xf32, #tpu.memory_space<vmem>>, vector<8x640xf32>,
    %5 = vector.extract_strided_slice %0 {offsets = [0, 2], sizes = [8, 640], strides = [1, 1]} : vector<8x768xf32> to vector<8x640xf32>
    %c16 = arith.constant 16 : index
    %c0_4 = arith.constant 0 : index
    %6 = vector.load %arg4[%c16, %c0_4] : memref<200x640xf32, #tpu.memory_space<vmem>>, vector<8x640xf32>
    tpu.vector_store %arg4[%c16, %c0_4], %5 {strides = array<i32>} : memref<200x640xf32, #tpu.memory_space<vmem>>, vector<8x640xf32>,
    %7 = vector.extract_strided_slice %0 {offsets = [0, 3], sizes = [8, 640], strides = [1, 1]} : vector<8x768xf32> to vector<8x640xf32>
    %c24 = arith.constant 24 : index
    %c0_5 = arith.constant 0 : index
    %8 = vector.load %arg4[%c24, %c0_5] : memref<200x640xf32, #tpu.memory_space<vmem>>, vector<8x640xf32>
    tpu.vector_store %arg4[%c24, %c0_5], %7 {strides = array<i32>} : memref<200x640xf32, #tpu.memory_space<vmem>>, vector<8x640xf32>,
    %9 = vector.extract_strided_slice %0 {offsets = [0, 4], sizes = [8, 640], strides = [1, 1]} : vector<8x768xf32> to vector<8x640xf32>
    %c32 = arith.constant 32 : index
    %c0_6 = arith.constant 0 : index
    %10 = vector.load %arg4[%c32, %c0_6] : memref<200x640xf32, #tpu.memory_space<vmem>>, vector<8x640xf32>
    tpu.vector_store %arg4[%c32, %c0_6], %9 {strides = array<i32>} : memref<200x640xf32, #tpu.memory_space<vmem>>, vector<8x640xf32>,
    %11 = vector.extract_strided_slice %0 {offsets = [0, 18], sizes = [8, 640], strides = [1, 1]} : vector<8x768xf32> to vector<8x640xf32>
    %c40 = arith.constant 40 : index
    %c0_7 = arith.constant 0 : index
    %12 = vector.load %arg4[%c40, %c0_7] : memref<200x640xf32, #tpu.memory_space<vmem>>, vector<8x640xf32>
    tpu.vector_store %arg4[%c40, %c0_7], %11 {strides = array<i32>} : memref<200x640xf32, #tpu.memory_space<vmem>>, vector<8x640xf32>,
    %13 = vector.extract_strided_slice %0 {offsets = [0, 19], sizes = [8, 640], strides = [1, 1]} : vector<8x768xf32> to vector<8x640xf32>
    %c48 = arith.constant 48 : index
    %c0_8 = arith.constant 0 : index
    %14 = vector.load %arg4[%c48, %c0_8] : memref<200x640xf32, #tpu.memory_space<vmem>>, vector<8x640xf32>
    tpu.vector_store %arg4[%c48, %c0_8], %13 {strides = array<i32>} : memref<200x640xf32, #tpu.memory_space<vmem>>, vector<8x640xf32>,
    %15 = vector.extract_strided_slice %0 {offsets = [0, 20], sizes = [8, 640], strides = [1, 1]} : vector<8x768xf32> to vector<8x640xf32>
    %c56 = arith.constant 56 : index
    %c0_9 = arith.constant 0 : index
    %16 = vector.load %arg4[%c56, %c0_9] : memref<200x640xf32, #tpu.memory_space<vmem>>, vector<8x640xf32>
    tpu.vector_store %arg4[%c56, %c0_9], %15 {strides = array<i32>} : memref<200x640xf32, #tpu.memory_space<vmem>>, vector<8x640xf32>,
    %17 = vector.extract_strided_slice %0 {offsets = [0, 21], sizes = [8, 640], strides = [1, 1]} : vector<8x768xf32> to vector<8x640xf32>
    %c64 = arith.constant 64 : index
    %c0_10 = arith.constant 0 : index
    %18 = vector.load %arg4[%c64, %c0_10] : memref<200x640xf32, #tpu.memory_space<vmem>>, vector<8x640xf32>
    tpu.vector_store %arg4[%c64, %c0_10], %17 {strides = array<i32>} : memref<200x640xf32, #tpu.memory_space<vmem>>, vector<8x640xf32>,
    %19 = vector.extract_strided_slice %0 {offsets = [0, 22], sizes = [8, 640], strides = [1, 1]} : vector<8x768xf32> to vector<8x640xf32>
    %c72 = arith.constant 72 : index
    %c0_11 = arith.constant 0 : index
    %20 = vector.load %arg4[%c72, %c0_11] : memref<200x640xf32, #tpu.memory_space<vmem>>, vector<8x640xf32>
    tpu.vector_store %arg4[%c72, %c0_11], %19 {strides = array<i32>} : memref<200x640xf32, #tpu.memory_space<vmem>>, vector<8x640xf32>,
    %21 = vector.extract_strided_slice %0 {offsets = [0, 36], sizes = [8, 640], strides = [1, 1]} : vector<8x768xf32> to vector<8x640xf32>
    %c80 = arith.constant 80 : index
    %c0_12 = arith.constant 0 : index
    %22 = vector.load %arg4[%c80, %c0_12] : memref<200x640xf32, #tpu.memory_space<vmem>>, vector<8x640xf32>
    tpu.vector_store %arg4[%c80, %c0_12], %21 {strides = array<i32>} : memref<200x640xf32, #tpu.memory_space<vmem>>, vector<8x640xf32>,
    %23 = vector.extract_strided_slice %0 {offsets = [0, 37], sizes = [8, 640], strides = [1, 1]} : vector<8x768xf32> to vector<8x640xf32>
    %c88 = arith.constant 88 : index
    %c0_13 = arith.constant 0 : index
    %24 = vector.load %arg4[%c88, %c0_13] : memref<200x640xf32, #tpu.memory_space<vmem>>, vector<8x640xf32>
    tpu.vector_store %arg4[%c88, %c0_13], %23 {strides = array<i32>} : memref<200x640xf32, #tpu.memory_space<vmem>>, vector<8x640xf32>,
    %25 = vector.extract_strided_slice %0 {offsets = [0, 38], sizes = [8, 640], strides = [1, 1]} : vector<8x768xf32> to vector<8x640xf32>
    %c96 = arith.constant 96 : index
    %c0_14 = arith.constant 0 : index
    %26 = vector.load %arg4[%c96, %c0_14] : memref<200x640xf32, #tpu.memory_space<vmem>>, vector<8x640xf32>
    tpu.vector_store %arg4[%c96, %c0_14], %25 {strides = array<i32>} : memref<200x640xf32, #tpu.memory_space<vmem>>, vector<8x640xf32>,
    %27 = vector.extract_strided_slice %0 {offsets = [0, 39], sizes = [8, 640], strides = [1, 1]} : vector<8x768xf32> to vector<8x640xf32>
    %c104 = arith.constant 104 : index
    %c0_15 = arith.constant 0 : index
    %28 = vector.load %arg4[%c104, %c0_15] : memref<200x640xf32, #tpu.memory_space<vmem>>, vector<8x640xf32>
    tpu.vector_store %arg4[%c104, %c0_15], %27 {strides = array<i32>} : memref<200x640xf32, #tpu.memory_space<vmem>>, vector<8x640xf32>,
    %29 = vector.extract_strided_slice %0 {offsets = [0, 40], sizes = [8, 640], strides = [1, 1]} : vector<8x768xf32> to vector<8x640xf32>
    %c112 = arith.constant 112 : index
    %c0_16 = arith.constant 0 : index
    %30 = vector.load %arg4[%c112, %c0_16] : memref<200x640xf32, #tpu.memory_space<vmem>>, vector<8x640xf32>
    tpu.vector_store %arg4[%c112, %c0_16], %29 {strides = array<i32>} : memref<200x640xf32, #tpu.memory_space<vmem>>, vector<8x640xf32>,
    %31 = vector.extract_strided_slice %0 {offsets = [0, 54], sizes = [8, 640], strides = [1, 1]} : vector<8x768xf32> to vector<8x640xf32>
    %c120 = arith.constant 120 : index
    %c0_17 = arith.constant 0 : index
    %32 = vector.load %arg4[%c120, %c0_17] : memref<200x640xf32, #tpu.memory_space<vmem>>, vector<8x640xf32>
    tpu.vector_store %arg4[%c120, %c0_17], %31 {strides = array<i32>} : memref<200x640xf32, #tpu.memory_space<vmem>>, vector<8x640xf32>,
    %33 = vector.extract_strided_slice %0 {offsets = [0, 55], sizes = [8, 640], strides = [1, 1]} : vector<8x768xf32> to vector<8x640xf32>
    %c128 = arith.constant 128 : index
    %c0_18 = arith.constant 0 : index
    %34 = vector.load %arg4[%c128, %c0_18] : memref<200x640xf32, #tpu.memory_space<vmem>>, vector<8x640xf32>
    tpu.vector_store %arg4[%c128, %c0_18], %33 {strides = array<i32>} : memref<200x640xf32, #tpu.memory_space<vmem>>, vector<8x640xf32>,
    %35 = vector.extract_strided_slice %0 {offsets = [0, 56], sizes = [8, 640], strides = [1, 1]} : vector<8x768xf32> to vector<8x640xf32>
    %c136 = arith.constant 136 : index
    %c0_19 = arith.constant 0 : index
    %36 = vector.load %arg4[%c136, %c0_19] : memref<200x640xf32, #tpu.memory_space<vmem>>, vector<8x640xf32>
    tpu.vector_store %arg4[%c136, %c0_19], %35 {strides = array<i32>} : memref<200x640xf32, #tpu.memory_space<vmem>>, vector<8x640xf32>,
    %37 = vector.extract_strided_slice %0 {offsets = [0, 57], sizes = [8, 640], strides = [1, 1]} : vector<8x768xf32> to vector<8x640xf32>
    %c144 = arith.constant 144 : index
    %c0_20 = arith.constant 0 : index
    %38 = vector.load %arg4[%c144, %c0_20] : memref<200x640xf32, #tpu.memory_space<vmem>>, vector<8x640xf32>
    tpu.vector_store %arg4[%c144, %c0_20], %37 {strides = array<i32>} : memref<200x640xf32, #tpu.memory_space<vmem>>, vector<8x640xf32>,
    %39 = vector.extract_strided_slice %0 {offsets = [0, 58], sizes = [8, 640], strides = [1, 1]} : vector<8x768xf32> to vector<8x640xf32>
    %c152 = arith.constant 152 : index
    %c0_21 = arith.constant 0 : index
    %40 = vector.load %arg4[%c152, %c0_21] : memref<200x640xf32, #tpu.memory_space<vmem>>, vector<8x640xf32>
    tpu.vector_store %arg4[%c152, %c0_21], %39 {strides = array<i32>} : memref<200x640xf32, #tpu.memory_space<vmem>>, vector<8x640xf32>,
    %41 = vector.extract_strided_slice %0 {offsets = [0, 72], sizes = [8, 640], strides = [1, 1]} : vector<8x768xf32> to vector<8x640xf32>
    %c160 = arith.constant 160 : index
    %c0_22 = arith.constant 0 : index
    %42 = vector.load %arg4[%c160, %c0_22] : memref<200x640xf32, #tpu.memory_space<vmem>>, vector<8x640xf32>
    tpu.vector_store %arg4[%c160, %c0_22], %41 {strides = array<i32>} : memref<200x640xf32, #tpu.memory_space<vmem>>, vector<8x640xf32>,
    %43 = vector.extract_strided_slice %0 {offsets = [0, 73], sizes = [8, 640], strides = [1, 1]} : vector<8x768xf32> to vector<8x640xf32>
    %c168 = arith.constant 168 : index
    %c0_23 = arith.constant 0 : index
    %44 = vector.load %arg4[%c168, %c0_23] : memref<200x640xf32, #tpu.memory_space<vmem>>, vector<8x640xf32>
    tpu.vector_store %arg4[%c168, %c0_23], %43 {strides = array<i32>} : memref<200x640xf32, #tpu.memory_space<vmem>>, vector<8x640xf32>,
    %45 = vector.extract_strided_slice %0 {offsets = [0, 74], sizes = [8, 640], strides = [1, 1]} : vector<8x768xf32> to vector<8x640xf32>
    %c176 = arith.constant 176 : index
    %c0_24 = arith.constant 0 : index
    %46 = vector.load %arg4[%c176, %c0_24] : memref<200x640xf32, #tpu.memory_space<vmem>>, vector<8x640xf32>
    tpu.vector_store %arg4[%c176, %c0_24], %45 {strides = array<i32>} : memref<200x640xf32, #tpu.memory_space<vmem>>, vector<8x640xf32>,
    %47 = vector.extract_strided_slice %0 {offsets = [0, 75], sizes = [8, 640], strides = [1, 1]} : vector<8x768xf32> to vector<8x640xf32>
    %c184 = arith.constant 184 : index
    %c0_25 = arith.constant 0 : index
    %48 = vector.load %arg4[%c184, %c0_25] : memref<200x640xf32, #tpu.memory_space<vmem>>, vector<8x640xf32>
    tpu.vector_store %arg4[%c184, %c0_25], %47 {strides = array<i32>} : memref<200x640xf32, #tpu.memory_space<vmem>>, vector<8x640xf32>,
    %49 = vector.extract_strided_slice %0 {offsets = [0, 76], sizes = [8, 640], strides = [1, 1]} : vector<8x768xf32> to vector<8x640xf32>
    %c192 = arith.constant 192 : index
    %c0_26 = arith.constant 0 : index
    %50 = vector.load %arg4[%c192, %c0_26] : memref<200x640xf32, #tpu.memory_space<vmem>>, vector<8x640xf32>
    tpu.vector_store %arg4[%c192, %c0_26], %49 {strides = array<i32>} : memref<200x640xf32, #tpu.memory_space<vmem>>, vector<8x640xf32>,
    %c0_27 = arith.constant 0 : index
    %c0_28 = arith.constant 0 : index
    %51 = vector.load %arg1[%c0_27, %c0_28] : memref<8x200xf32, #tpu.memory_space<vmem>>, vector<8x200xf32>
    %c0_29 = arith.constant 0 : index
    %c0_30 = arith.constant 0 : index
    %52 = vector.load %arg4[%c0_29, %c0_30] : memref<200x640xf32, #tpu.memory_space<vmem>>, vector<200x640xf32>
    %cst = arith.constant dense<0.000000e+00> : vector<8x640xf32>
    %53 = tpu.matmul %51, %52, %cst {dimension_numbers = #tpu.dot_dimension_numbers<[1], [0], [0], [1], [0, 0, 1, 1], [], []>} : vector<8x200xf32>, vector<200x640xf32>, vector<8x640xf32> -> vector<8x640xf32>
    %54 = tpu.iota {dimensions = array<i32: 1>} : vector<1x640xi32>
    %55 = arith.sitofp %54 : vector<1x640xi32> to vector<1x640xf32>
    %cst_31 = arith.constant 3.240000e+02 : f32
    %56 = vector.broadcast %cst_31 : f32 to vector<1x640xf32>
    %57 = arith.divf %55, %56 : vector<1x640xf32>
    %58 = math.floor %57 : vector<1x640xf32>
    %cst_32 = arith.constant 3.240000e+02 : f32
    %59 = vector.broadcast %cst_32 : f32 to vector<1x640xf32>
    %60 = arith.mulf %58, %59 : vector<1x640xf32>
    %61 = arith.subf %55, %60 : vector<1x640xf32>
    %cst_33 = arith.constant 1.800000e+01 : f32
    %62 = vector.broadcast %cst_33 : f32 to vector<1x640xf32>
    %63 = arith.divf %61, %62 : vector<1x640xf32>
    %64 = math.floor %63 : vector<1x640xf32>
    %cst_34 = arith.constant 1.800000e+01 : f32
    %65 = vector.broadcast %cst_34 : f32 to vector<1x640xf32>
    %66 = arith.mulf %64, %65 : vector<1x640xf32>
    %67 = arith.subf %61, %66 : vector<1x640xf32>
    %cst_35 = arith.constant 6.480000e+02 : f32
    %68 = vector.broadcast %cst_35 : f32 to vector<1x640xf32>
    %69 = arith.cmpf olt, %55, %68 : vector<1x640xf32>
    %cst_36 = arith.constant 2.520000e+02 : f32
    %70 = vector.broadcast %cst_36 : f32 to vector<1x640xf32>
    %71 = arith.cmpf olt, %61, %70 : vector<1x640xf32>
    %72 = arith.andi %69, %71 : vector<1x640xi1>
    %cst_37 = arith.constant 1.400000e+01 : f32
    %73 = vector.broadcast %cst_37 : f32 to vector<1x640xf32>
    %74 = arith.cmpf olt, %67, %73 : vector<1x640xf32>
    %75 = arith.andi %72, %74 : vector<1x640xi1>
    %cst_38 = arith.constant 0.000000e+00 : f32
    %76 = vector.shape_cast %75 : vector<1x640xi1> to vector<1x640xi1>
    %77 = vector.broadcast %76 : vector<1x640xi1> to vector<8x640xi1>
    %78 = vector.broadcast %cst_38 : f32 to vector<8x640xf32>
    %79 = arith.select %77, %53, %78 : vector<8x640xi1>, vector<8x640xf32>
    %cst_39 = arith.constant dense<0.000000e+00> : vector<8xf32>
    %80 = vector.multi_reduction <add>, %79, %cst_39 [1] : vector<8x640xf32> to vector<8xf32>
    %81 = vector.shape_cast %80 : vector<8xf32> to vector<8x1xf32>
    %cst_40 = arith.constant 0.00255102036 : f32
    %82 = vector.broadcast %cst_40 : f32 to vector<8x1xf32>
    %83 = arith.mulf %81, %82 : vector<8x1xf32>
    %84 = vector.broadcast %83 : vector<8x1xf32> to vector<8x640xf32>
    %85 = arith.subf %53, %84 : vector<8x640xf32>
    %cst_41 = arith.constant 0.000000e+00 : f32
    %86 = vector.shape_cast %75 : vector<1x640xi1> to vector<1x640xi1>
    %87 = vector.broadcast %86 : vector<1x640xi1> to vector<8x640xi1>
    %88 = vector.broadcast %cst_41 : f32 to vector<8x640xf32>
    %89 = arith.select %87, %85, %88 : vector<8x640xi1>, vector<8x640xf32>
    %90 = arith.mulf %89, %89 : vector<8x640xf32>
    %cst_42 = arith.constant dense<0.000000e+00> : vector<8xf32>
    %91 = vector.multi_reduction <add>, %90, %cst_42 [1] : vector<8x640xf32> to vector<8xf32>
    %92 = vector.shape_cast %91 : vector<8xf32> to vector<8x1xf32>
    %cst_43 = arith.constant 0.00255102036 : f32
    %93 = vector.broadcast %cst_43 : f32 to vector<8x1xf32>
    %94 = arith.mulf %92, %93 : vector<8x1xf32>
    %cst_44 = arith.constant 9.99999974E-6 : f32
    %95 = vector.broadcast %cst_44 : f32 to vector<8x1xf32>
    %96 = arith.addf %94, %95 : vector<8x1xf32>
    %97 = math.rsqrt %96 : vector<8x1xf32>
    %c0_45 = arith.constant 0 : index
    %c0_46 = arith.constant 0 : index
    %98 = vector.load %arg2[%c0_45, %c0_46] : memref<8x2xf32, #tpu.memory_space<vmem>>, vector<8x2xf32>
    %99 = vector.extract_strided_slice %98 {offsets = [0, 0], sizes = [8, 1], strides = [1, 1]} : vector<8x2xf32> to vector<8x1xf32>
    %100 = arith.mulf %97, %99 : vector<8x1xf32>
    %101 = vector.extract_strided_slice %98 {offsets = [0, 1], sizes = [8, 1], strides = [1, 1]} : vector<8x2xf32> to vector<8x1xf32>
    %102 = arith.mulf %83, %100 : vector<8x1xf32>
    %103 = arith.subf %101, %102 : vector<8x1xf32>
    %104 = vector.broadcast %100 : vector<8x1xf32> to vector<8x640xf32>
    %105 = arith.mulf %53, %104 : vector<8x640xf32>
    %106 = vector.broadcast %103 : vector<8x1xf32> to vector<8x640xf32>
    %107 = arith.addf %105, %106 : vector<8x640xf32>
    %cst_47 = arith.constant 0.000000e+00 : f32
    %108 = vector.broadcast %cst_47 : f32 to vector<8x640xf32>
    %109 = arith.maximumf %107, %108 : vector<8x640xf32>
    %c0_48 = arith.constant 0 : index
    %c0_49 = arith.constant 0 : index
    %110 = vector.load %arg3[%c0_48, %c0_49] : memref<8x640xf32, #tpu.memory_space<vmem>>, vector<8x640xf32>
    tpu.vector_store %arg3[%c0_48, %c0_49], %109 {strides = array<i32>} : memref<8x640xf32, #tpu.memory_space<vmem>>, vector<8x640xf32>,
    return
  }
}

</mosaic_0001>

<llo_original>
// kernel: tpu_custom_call.1
$region0: #{tpu_custom_call.1}
  #allocation0 [shape = 'u32[]', space=smem, size = 0x4, offset = 0x4, fixed_abs, tag = 'smem constant byte address 0x4 - core index']
  #allocation1 [shape = 'u32[144,128]{1,0:T(1,128)}', space=vmem, size = 0x12000, scoped, tag = 'internal scratch']
  #allocation2 [shape = 'f32[200,640]{1,0:T(8,128)}', space=vmem, size = 0x7d000, scoped, tag = 'scratch operand']
  %s0 = inlined_call_operand.hbm [shape: f32[8,768], index: 0, kind: input, shape index: {}]
  %s1 = inlined_call_operand.hbm [shape: f32[8,200], index: 1, kind: input, shape index: {}]
  %s2 = inlined_call_operand.vmem [shape: f32[8,2], index: 2, kind: input, shape index: {}]
  %s3 = inlined_call_operand.hbm [shape: f32[8,640], index: 3, kind: output, shape index: {}]
  %s4 = sld [smem:[#allocation0]]
  $region30: #{tpu_custom_call.1} parent=0
    _
  %s6 = ssub.s32 1, %s4
  %s7 = scalar_select 0, %s6, %s4
  $region1: #{tpu_custom_call.1} parent=0
    #allocation3 [shape = 'u8[24576]{0}', space=vmem, size = 0x6000, scoped, tag = 'input window, operand 0, single buffered']
    #allocation4 [shape = 's32[1]{0}', space=sflag, size = 0x4, scoped, tag = 'scoped memory for tpu_custom_call.1']
    #allocation5 [shape = 's32[1]{0}', space=sflag, size = 0x4, scoped, tag = 'scoped memory for tpu_custom_call.1']
    #allocation6 [shape = 'u8[8192]{0}', space=vmem, size = 0x2000, scoped, tag = 'input window, operand 1, single buffered']
    #allocation7 [shape = 's32[1]{0}', space=sflag, size = 0x4, scoped, tag = 'scoped memory for tpu_custom_call.1']
    #allocation8 [shape = 'u8[20480]{0}', space=vmem, size = 0x5000, scoped, tag = 'output window, operand 0, single buffered']
    %8 = vsyncpa [#allocation4], 0
    %9 = vsyncpa [#allocation7], 0
    %10 = vsyncpa [#allocation5], 0
    // Predicated region
    $region2: #{tpu_custom_call.1} parent=1 // pred_check
      _
    $region3: #{tpu_custom_call.1} parent=1 // pred_check_branch
      %12 = sbr.rel (0) target = $region5
    $region4: #{tpu_custom_call.1} parent=1 // pred_region
      %s14 = ssub.s32 768, 768
      %15 = vsyncadd [#allocation4], %s14
      %s17 = sshll.u32 [#allocation3], 4
      %s18 = int_to_ptr.vmem [resolvable:$true] %s17
      %20 = dma.hbm_to_vmem [thread:$0]  %s0, 768, %s18, [#allocation4]
    $region5: #{tpu_custom_call.1} parent=1 // pred_fallthru
      _
    // Predicated region
    $region6: #{tpu_custom_call.1} parent=1 // pred_check
      _
    $region7: #{tpu_custom_call.1} parent=1 // pred_check_branch
      %22 = sbr.rel (0) target = $region9
    $region8: #{tpu_custom_call.1} parent=1 // pred_region
      %s24 = ssub.s32 256, 256
      %25 = vsyncadd [#allocation7], %s24
      %s27 = sshll.u32 [#allocation6], 4
      %s28 = int_to_ptr.vmem [resolvable:$true] %s27
      %30 = dma.hbm_to_vmem [thread:$0]  %s1, 256, %s28, [#allocation7]
    $region9: #{tpu_custom_call.1} parent=1 // pred_fallthru
      _
    // Predicated region
    $region10: #{tpu_custom_call.1} parent=1 // pred_check
      _
    $region11: #{tpu_custom_call.1} parent=1 // pred_check_branch
      %32 = sbr.rel (0) target = $region13
    $region12: #{tpu_custom_call.1} parent=1 // pred_region
      _
    $region13: #{tpu_custom_call.1} parent=1 // pred_fallthru
      _
    // Predicated region
    $region14: #{tpu_custom_call.1} parent=1 // pred_check
      _
    $region15: #{tpu_custom_call.1} parent=1 // pred_check_branch
      %34 = sbr.rel (0) target = $region17
    $region16: #{tpu_custom_call.1} parent=1 // pred_region
      %35 = dma.done [#allocation4], 768
    $region17: #{tpu_custom_call.1} parent=1 // pred_fallthru
      _
    // Predicated region
    $region18: #{tpu_custom_call.1} parent=1 // pred_check
      _
    $region19: #{tpu_custom_call.1} parent=1 // pred_check_branch
      %37 = sbr.rel (0) target = $region21
    $region20: #{tpu_custom_call.1} parent=1 // pred_region
      %38 = dma.done [#allocation7], 256
    $region21: #{tpu_custom_call.1} parent=1 // pred_fallthru
      _
    %v39 = vld [vmem:[#allocation3] sm:$0xff]
    %v40 = vld [vmem:[#allocation3 + $0x8] sm:$0xff]
    %v41 = vld [vmem:[#allocation3 + $0x10] sm:$0xff]
    %v42 = vld [vmem:[#allocation3 + $0x18] sm:$0xff]
    %v43 = vld [vmem:[#allocation3 + $0x20] sm:$0xff]
    %v44 = vld [vmem:[#allocation3 + $0x28] sm:$0xff]
    %45 = vst [vmem:[#allocation2] sm:$0xff] %v39
    %46 = vst [vmem:[#allocation2 + $0x8] sm:$0xff] %v40
    %47 = vst [vmem:[#allocation2 + $0x10] sm:$0xff] %v41
    %48 = vst [vmem:[#allocation2 + $0x18] sm:$0xff] %v42
    %49 = vst [vmem:[#allocation2 + $0x20] sm:$0xff] %v43
    %56 = vrot.lane.b32.xlu0 %v39, 127
    %v57 = vpop.permute.xlu0 %56
    %58 = vrot.lane.b32.xlu0 %v40, 127
    %v59 = vpop.permute.xlu0 %58
    %60 = vrot.lane.b32.xlu0 %v41, 127
    %v61 = vpop.permute.xlu0 %60
    %62 = vrot.lane.b32.xlu0 %v42, 127
    %v63 = vpop.permute.xlu0 %62
    %64 = vrot.lane.b32.xlu0 %v43, 127
    %v65 = vpop.permute.xlu0 %64
    %66 = vrot.lane.b32.xlu0 %v44, 127
    %v67 = vpop.permute.xlu0 %66
    %vm68 = vcmask 1039360
    %v69 = vsel %vm68, %v57, %v59
    %v70 = vsel %vm68, %v59, %v61
    %v71 = vsel %vm68, %v61, %v63
    %v72 = vsel %vm68, %v63, %v65
    %v73 = vsel %vm68, %v65, %v67
    %79 = vst [vmem:[#allocation2 + $0x28] sm:$0xff] %v69
    %80 = vst [vmem:[#allocation2 + $0x30] sm:$0xff] %v70
    %81 = vst [vmem:[#allocation2 + $0x38] sm:$0xff] %v71
    %82 = vst [vmem:[#allocation2 + $0x40] sm:$0xff] %v72
    %83 = vst [vmem:[#allocation2 + $0x48] sm:$0xff] %v73
    %84 = vrot.lane.b32.xlu0 %v39, 126
    %v85 = vpop.permute.xlu0 %84
    %86 = vrot.lane.b32.xlu0 %v40, 126
    %v87 = vpop.permute.xlu0 %86
    %88 = vrot.lane.b32.xlu0 %v41, 126
    %v89 = vpop.permute.xlu0 %88
    %90 = vrot.lane.b32.xlu0 %v42, 126
    %v91 = vpop.permute.xlu0 %90
    %92 = vrot.lane.b32.xlu0 %v43, 126
    %v93 = vpop.permute.xlu0 %92
    %94 = vrot.lane.b32.xlu0 %v44, 126
    %v95 = vpop.permute.xlu0 %94
    %vm96 = vcmask 1031168
    %v97 = vsel %vm96, %v85, %v87
    %v98 = vsel %vm96, %v87, %v89
    %v99 = vsel %vm96, %v89, %v91
    %v100 = vsel %vm96, %v91, %v93
    %v101 = vsel %vm96, %v93, %v95
    %107 = vst [vmem:[#allocation2 + $0x50] sm:$0xff] %v97
    %108 = vst [vmem:[#allocation2 + $0x58] sm:$0xff] %v98
    %109 = vst [vmem:[#allocation2 + $0x60] sm:$0xff] %v99
    %110 = vst [vmem:[#allocation2 + $0x68] sm:$0xff] %v100
    %111 = vst [vmem:[#allocation2 + $0x70] sm:$0xff] %v101
    %112 = vrot.lane.b32.xlu0 %v39, 125
    %v113 = vpop.permute.xlu0 %112
    %114 = vrot.lane.b32.xlu0 %v40, 125
    %v115 = vpop.permute.xlu0 %114
    %116 = vrot.lane.b32.xlu0 %v41, 125
    %v117 = vpop.permute.xlu0 %116
    %118 = vrot.lane.b32.xlu0 %v42, 125
    %v119 = vpop.permute.xlu0 %118
    %120 = vrot.lane.b32.xlu0 %v43, 125
    %v121 = vpop.permute.xlu0 %120
    %122 = vrot.lane.b32.xlu0 %v44, 125
    %v123 = vpop.permute.xlu0 %122
    %vm124 = vcmask 1022976
    %v125 = vsel %vm124, %v113, %v115
    %v126 = vsel %vm124, %v115, %v117
    %v127 = vsel %vm124, %v117, %v119
    %v128 = vsel %vm124, %v119, %v121
    %v129 = vsel %vm124, %v121, %v123
    %135 = vst [vmem:[#allocation2 + $0x78] sm:$0xff] %v125
    %136 = vst [vmem:[#allocation2 + $0x80] sm:$0xff] %v126
    %137 = vst [vmem:[#allocation2 + $0x88] sm:$0xff] %v127
    %138 = vst [vmem:[#allocation2 + $0x90] sm:$0xff] %v128
    %139 = vst [vmem:[#allocation2 + $0x98] sm:$0xff] %v129
    %140 = vrot.lane.b32.xlu0 %v39, 124
    %v141 = vpop.permute.xlu0 %140
    %142 = vrot.lane.b32.xlu0 %v40, 124
    %v143 = vpop.permute.xlu0 %142
    %144 = vrot.lane.b32.xlu0 %v41, 124
    %v145 = vpop.permute.xlu0 %144
    %146 = vrot.lane.b32.xlu0 %v42, 124
    %v147 = vpop.permute.xlu0 %146
    %148 = vrot.lane.b32.xlu0 %v43, 124
    %v149 = vpop.permute.xlu0 %148
    %150 = vrot.lane.b32.xlu0 %v44, 124
    %v151 = vpop.permute.xlu0 %150
    %vm152 = vcmask 1014784
    %v153 = vsel %vm152, %v141, %v143
    %v154 = vsel %vm152, %v143, %v145
    %v155 = vsel %vm152, %v145, %v147
    %v156 = vsel %vm152, %v147, %v149
    %v157 = vsel %vm152, %v149, %v151
    %163 = vst [vmem:[#allocation2 + $0xa0] sm:$0xff] %v153
    %164 = vst [vmem:[#allocation2 + $0xa8] sm:$0xff] %v154
    %165 = vst [vmem:[#allocation2 + $0xb0] sm:$0xff] %v155
    %166 = vst [vmem:[#allocation2 + $0xb8] sm:$0xff] %v156
    %167 = vst [vmem:[#allocation2 + $0xc0] sm:$0xff] %v157
    %168 = vrot.lane.b32.xlu0 %v39, 110
    %v169 = vpop.permute.xlu0 %168
    %170 = vrot.lane.b32.xlu0 %v40, 110
    %v171 = vpop.permute.xlu0 %170
    %172 = vrot.lane.b32.xlu0 %v41, 110
    %v173 = vpop.permute.xlu0 %172
    %174 = vrot.lane.b32.xlu0 %v42, 110
    %v175 = vpop.permute.xlu0 %174
    %176 = vrot.lane.b32.xlu0 %v43, 110
    %v177 = vpop.permute.xlu0 %176
    %178 = vrot.lane.b32.xlu0 %v44, 110
    %v179 = vpop.permute.xlu0 %178
    %vm180 = vcmask 900096
    %v181 = vsel %vm180, %v169, %v171
    %v182 = vsel %vm180, %v171, %v173
    %v183 = vsel %vm180, %v173, %v175
    %v184 = vsel %vm180, %v175, %v177
    %v185 = vsel %vm180, %v177, %v179
    %191 = vst [vmem:[#allocation2 + $0xc8] sm:$0xff] %v181
    %192 = vst [vmem:[#allocation2 + $0xd0] sm:$0xff] %v182
    %193 = vst [vmem:[#allocation2 + $0xd8] sm:$0xff] %v183
    %194 = vst [vmem:[#allocation2 + $0xe0] sm:$0xff] %v184
    %195 = vst [vmem:[#allocation2 + $0xe8] sm:$0xff] %v185
    %196 = vrot.lane.b32.xlu0 %v39, 109
    %v197 = vpop.permute.xlu0 %196
    %198 = vrot.lane.b32.xlu0 %v40, 109
    %v199 = vpop.permute.xlu0 %198
    %200 = vrot.lane.b32.xlu0 %v41, 109
    %v201 = vpop.permute.xlu0 %200
    %202 = vrot.lane.b32.xlu0 %v42, 109
    %v203 = vpop.permute.xlu0 %202
    %204 = vrot.lane.b32.xlu0 %v43, 109
    %v205 = vpop.permute.xlu0 %204
    %206 = vrot.lane.b32.xlu0 %v44, 109
    %v207 = vpop.permute.xlu0 %206
    %vm208 = vcmask 891904
    %v209 = vsel %vm208, %v197, %v199
    %v210 = vsel %vm208, %v199, %v201
    %v211 = vsel %vm208, %v201, %v203
    %v212 = vsel %vm208, %v203, %v205
    %v213 = vsel %vm208, %v205, %v207
    %219 = vst [vmem:[#allocation2 + $0xf0] sm:$0xff] %v209
    %220 = vst [vmem:[#allocation2 + $0xf8] sm:$0xff] %v210
    %221 = vst [vmem:[#allocation2 + $0x100] sm:$0xff] %v211
    %222 = vst [vmem:[#allocation2 + $0x108] sm:$0xff] %v212
    %223 = vst [vmem:[#allocation2 + $0x110] sm:$0xff] %v213
    %224 = vrot.lane.b32.xlu0 %v39, 108
    %v225 = vpop.permute.xlu0 %224
    %226 = vrot.lane.b32.xlu0 %v40, 108
    %v227 = vpop.permute.xlu0 %226
    %228 = vrot.lane.b32.xlu0 %v41, 108
    %v229 = vpop.permute.xlu0 %228
    %230 = vrot.lane.b32.xlu0 %v42, 108
    %v231 = vpop.permute.xlu0 %230
    %232 = vrot.lane.b32.xlu0 %v43, 108
    %v233 = vpop.permute.xlu0 %232
    %234 = vrot.lane.b32.xlu0 %v44, 108
    %v235 = vpop.permute.xlu0 %234
    %vm236 = vcmask 883712
    %v237 = vsel %vm236, %v225, %v227
    %v238 = vsel %vm236, %v227, %v229
    %v239 = vsel %vm236, %v229, %v231
    %v240 = vsel %vm236, %v231, %v233
    %v241 = vsel %vm236, %v233, %v235
    %247 = vst [vmem:[#allocation2 + $0x118] sm:$0xff] %v237
    %248 = vst [vmem:[#allocation2 + $0x120] sm:$0xff] %v238
    %249 = vst [vmem:[#allocation2 + $0x128] sm:$0xff] %v239
    %250 = vst [vmem:[#allocation2 + $0x130] sm:$0xff] %v240
    %251 = vst [vmem:[#allocation2 + $0x138] sm:$0xff] %v241
    %252 = vrot.lane.b32.xlu0 %v39, 107
    %v253 = vpop.permute.xlu0 %252
    %254 = vrot.lane.b32.xlu0 %v40, 107
    %v255 = vpop.permute.xlu0 %254
    %256 = vrot.lane.b32.xlu0 %v41, 107
    %v257 = vpop.permute.xlu0 %256
    %258 = vrot.lane.b32.xlu0 %v42, 107
    %v259 = vpop.permute.xlu0 %258
    %260 = vrot.lane.b32.xlu0 %v43, 107
    %v261 = vpop.permute.xlu0 %260
    %262 = vrot.lane.b32.xlu0 %v44, 107
    %v263 = vpop.permute.xlu0 %262
    %vm264 = vcmask 875520
    %v265 = vsel %vm264, %v253, %v255
    %v266 = vsel %vm264, %v255, %v257
    %v267 = vsel %vm264, %v257, %v259
    %v268 = vsel %vm264, %v259, %v261
    %v269 = vsel %vm264, %v261, %v263
    %275 = vst [vmem:[#allocation2 + $0x140] sm:$0xff] %v265
    %276 = vst [vmem:[#allocation2 + $0x148] sm:$0xff] %v266
    %277 = vst [vmem:[#allocation2 + $0x150] sm:$0xff] %v267
    %278 = vst [vmem:[#allocation2 + $0x158] sm:$0xff] %v268
    %279 = vst [vmem:[#allocation2 + $0x160] sm:$0xff] %v269
    %280 = vrot.lane.b32.xlu0 %v39, 106
    %v281 = vpop.permute.xlu0 %280
    %282 = vrot.lane.b32.xlu0 %v40, 106
    %v283 = vpop.permute.xlu0 %282
    %284 = vrot.lane.b32.xlu0 %v41, 106
    %v285 = vpop.permute.xlu0 %284
    %286 = vrot.lane.b32.xlu0 %v42, 106
    %v287 = vpop.permute.xlu0 %286
    %288 = vrot.lane.b32.xlu0 %v43, 106
    %v289 = vpop.permute.xlu0 %288
    %290 = vrot.lane.b32.xlu0 %v44, 106
    %v291 = vpop.permute.xlu0 %290
    %vm292 = vcmask 867328
    %v293 = vsel %vm292, %v281, %v283
    %v294 = vsel %vm292, %v283, %v285
    %v295 = vsel %vm292, %v285, %v287
    %v296 = vsel %vm292, %v287, %v289
    %v297 = vsel %vm292, %v289, %v291
    %303 = vst [vmem:[#allocation2 + $0x168] sm:$0xff] %v293
    %304 = vst [vmem:[#allocation2 + $0x170] sm:$0xff] %v294
    %305 = vst [vmem:[#allocation2 + $0x178] sm:$0xff] %v295
    %306 = vst [vmem:[#allocation2 + $0x180] sm:$0xff] %v296
    %307 = vst [vmem:[#allocation2 + $0x188] sm:$0xff] %v297
    %308 = vrot.lane.b32.xlu0 %v39, 92
    %v309 = vpop.permute.xlu0 %308
    %310 = vrot.lane.b32.xlu0 %v40, 92
    %v311 = vpop.permute.xlu0 %310
    %312 = vrot.lane.b32.xlu0 %v41, 92
    %v313 = vpop.permute.xlu0 %312
    %314 = vrot.lane.b32.xlu0 %v42, 92
    %v315 = vpop.permute.xlu0 %314
    %316 = vrot.lane.b32.xlu0 %v43, 92
    %v317 = vpop.permute.xlu0 %316
    %318 = vrot.lane.b32.xlu0 %v44, 92
    %v319 = vpop.permute.xlu0 %318
    %vm320 = vcmask 752640
    %v321 = vsel %vm320, %v309, %v311
    %v322 = vsel %vm320, %v311, %v313
    %v323 = vsel %vm320, %v313, %v315
    %v324 = vsel %vm320, %v315, %v317
    %v325 = vsel %vm320, %v317, %v319
    %331 = vst [vmem:[#allocation2 + $0x190] sm:$0xff] %v321
    %332 = vst [vmem:[#allocation2 + $0x198] sm:$0xff] %v322
    %333 = vst [vmem:[#allocation2 + $0x1a0] sm:$0xff] %v323
    %334 = vst [vmem:[#allocation2 + $0x1a8] sm:$0xff] %v324
    %335 = vst [vmem:[#allocation2 + $0x1b0] sm:$0xff] %v325
    %336 = vrot.lane.b32.xlu0 %v39, 91
    %v337 = vpop.permute.xlu0 %336
    %338 = vrot.lane.b32.xlu0 %v40, 91
    %v339 = vpop.permute.xlu0 %338
    %340 = vrot.lane.b32.xlu0 %v41, 91
    %v341 = vpop.permute.xlu0 %340
    %342 = vrot.lane.b32.xlu0 %v42, 91
    %v343 = vpop.permute.xlu0 %342
    %344 = vrot.lane.b32.xlu0 %v43, 91
    %v345 = vpop.permute.xlu0 %344
    %346 = vrot.lane.b32.xlu0 %v44, 91
    %v347 = vpop.permute.xlu0 %346
    %vm348 = vcmask 744448
    %v349 = vsel %vm348, %v337, %v339
    %v350 = vsel %vm348, %v339, %v341
    %v351 = vsel %vm348, %v341, %v343
    %v352 = vsel %vm348, %v343, %v345
    %v353 = vsel %vm348, %v345, %v347
    %359 = vst [vmem:[#allocation2 + $0x1b8] sm:$0xff] %v349
    %360 = vst [vmem:[#allocation2 + $0x1c0] sm:$0xff] %v350
    %361 = vst [vmem:[#allocation2 + $0x1c8] sm:$0xff] %v351
    %362 = vst [vmem:[#allocation2 + $0x1d0] sm:$0xff] %v352
    %363 = vst [vmem:[#allocation2 + $0x1d8] sm:$0xff] %v353
    %364 = vrot.lane.b32.xlu0 %v39, 90
    %v365 = vpop.permute.xlu0 %364
    %366 = vrot.lane.b32.xlu0 %v40, 90
    %v367 = vpop.permute.xlu0 %366
    %368 = vrot.lane.b32.xlu0 %v41, 90
    %v369 = vpop.permute.xlu0 %368
    %370 = vrot.lane.b32.xlu0 %v42, 90
    %v371 = vpop.permute.xlu0 %370
    %372 = vrot.lane.b32.xlu0 %v43, 90
    %v373 = vpop.permute.xlu0 %372
    %374 = vrot.lane.b32.xlu0 %v44, 90
    %v375 = vpop.permute.xlu0 %374
    %vm376 = vcmask 736256
    %v377 = vsel %vm376, %v365, %v367
    %v378 = vsel %vm376, %v367, %v369
    %v379 = vsel %vm376, %v369, %v371
    %v380 = vsel %vm376, %v371, %v373
    %v381 = vsel %vm376, %v373, %v375
    %387 = vst [vmem:[#allocation2 + $0x1e0] sm:$0xff] %v377
    %388 = vst [vmem:[#allocation2 + $0x1e8] sm:$0xff] %v378
    %389 = vst [vmem:[#allocation2 + $0x1f0] sm:$0xff] %v379
    %390 = vst [vmem:[#allocation2 + $0x1f8] sm:$0xff] %v380
    %391 = vst [vmem:[#allocation2 + $0x200] sm:$0xff] %v381
    %392 = vrot.lane.b32.xlu0 %v39, 89
    %v393 = vpop.permute.xlu0 %392
    %394 = vrot.lane.b32.xlu0 %v40, 89
    %v395 = vpop.permute.xlu0 %394
    %396 = vrot.lane.b32.xlu0 %v41, 89
    %v397 = vpop.permute.xlu0 %396
    %398 = vrot.lane.b32.xlu0 %v42, 89
    %v399 = vpop.permute.xlu0 %398
    %400 = vrot.lane.b32.xlu0 %v43, 89
    %v401 = vpop.permute.xlu0 %400
    %402 = vrot.lane.b32.xlu0 %v44, 89
    %v403 = vpop.permute.xlu0 %402
    %vm404 = vcmask 728064
    %v405 = vsel %vm404, %v393, %v395
    %v406 = vsel %vm404, %v395, %v397
    %v407 = vsel %vm404, %v397, %v399
    %v408 = vsel %vm404, %v399, %v401
    %v409 = vsel %vm404, %v401, %v403
    %415 = vst [vmem:[#allocation2 + $0x208] sm:$0xff] %v405
    %416 = vst [vmem:[#allocation2 + $0x210] sm:$0xff] %v406
    %417 = vst [vmem:[#allocation2 + $0x218] sm:$0xff] %v407
    %418 = vst [vmem:[#allocation2 + $0x220] sm:$0xff] %v408
    %419 = vst [vmem:[#allocation2 + $0x228] sm:$0xff] %v409
    %420 = vrot.lane.b32.xlu0 %v39, 88
    %v421 = vpop.permute.xlu0 %420
    %422 = vrot.lane.b32.xlu0 %v40, 88
    %v423 = vpop.permute.xlu0 %422
    %424 = vrot.lane.b32.xlu0 %v41, 88
    %v425 = vpop.permute.xlu0 %424
    %426 = vrot.lane.b32.xlu0 %v42, 88
    %v427 = vpop.permute.xlu0 %426
    %428 = vrot.lane.b32.xlu0 %v43, 88
    %v429 = vpop.permute.xlu0 %428
    %430 = vrot.lane.b32.xlu0 %v44, 88
    %v431 = vpop.permute.xlu0 %430
    %vm432 = vcmask 719872
    %v433 = vsel %vm432, %v421, %v423
    %v434 = vsel %vm432, %v423, %v425
    %v435 = vsel %vm432, %v425, %v427
    %v436 = vsel %vm432, %v427, %v429
    %v437 = vsel %vm432, %v429, %v431
    %443 = vst [vmem:[#allocation2 + $0x230] sm:$0xff] %v433
    %444 = vst [vmem:[#allocation2 + $0x238] sm:$0xff] %v434
    %445 = vst [vmem:[#allocation2 + $0x240] sm:$0xff] %v435
    %446 = vst [vmem:[#allocation2 + $0x248] sm:$0xff] %v436
    %447 = vst [vmem:[#allocation2 + $0x250] sm:$0xff] %v437
    %448 = vrot.lane.b32.xlu0 %v39, 74
    %v449 = vpop.permute.xlu0 %448
    %450 = vrot.lane.b32.xlu0 %v40, 74
    %v451 = vpop.permute.xlu0 %450
    %452 = vrot.lane.b32.xlu0 %v41, 74
    %v453 = vpop.permute.xlu0 %452
    %454 = vrot.lane.b32.xlu0 %v42, 74
    %v455 = vpop.permute.xlu0 %454
    %456 = vrot.lane.b32.xlu0 %v43, 74
    %v457 = vpop.permute.xlu0 %456
    %458 = vrot.lane.b32.xlu0 %v44, 74
    %v459 = vpop.permute.xlu0 %458
    %vm460 = vcmask 605184
    %v461 = vsel %vm460, %v449, %v451
    %v462 = vsel %vm460, %v451, %v453
    %v463 = vsel %vm460, %v453, %v455
    %v464 = vsel %vm460, %v455, %v457
    %v465 = vsel %vm460, %v457, %v459
    %471 = vst [vmem:[#allocation2 + $0x258] sm:$0xff] %v461
    %472 = vst [vmem:[#allocation2 + $0x260] sm:$0xff] %v462
    %473 = vst [vmem:[#allocation2 + $0x268] sm:$0xff] %v463
    %474 = vst [vmem:[#allocation2 + $0x270] sm:$0xff] %v464
    %475 = vst [vmem:[#allocation2 + $0x278] sm:$0xff] %v465
    %476 = vrot.lane.b32.xlu0 %v39, 73
    %v477 = vpop.permute.xlu0 %476
    %478 = vrot.lane.b32.xlu0 %v40, 73
    %v479 = vpop.permute.xlu0 %478
    %480 = vrot.lane.b32.xlu0 %v41, 73
    %v481 = vpop.permute.xlu0 %480
    %482 = vrot.lane.b32.xlu0 %v42, 73
    %v483 = vpop.permute.xlu0 %482
    %484 = vrot.lane.b32.xlu0 %v43, 73
    %v485 = vpop.permute.xlu0 %484
    %486 = vrot.lane.b32.xlu0 %v44, 73
    %v487 = vpop.permute.xlu0 %486
    %vm488 = vcmask 596992
    %v489 = vsel %vm488, %v477, %v479
    %v490 = vsel %vm488, %v479, %v481
    %v491 = vsel %vm488, %v481, %v483
    %v492 = vsel %vm488, %v483, %v485
    %v493 = vsel %vm488, %v485, %v487
    %499 = vst [vmem:[#allocation2 + $0x280] sm:$0xff] %v489
    %500 = vst [vmem:[#allocation2 + $0x288] sm:$0xff] %v490
    %501 = vst [vmem:[#allocation2 + $0x290] sm:$0xff] %v491
    %502 = vst [vmem:[#allocation2 + $0x298] sm:$0xff] %v492
    %503 = vst [vmem:[#allocation2 + $0x2a0] sm:$0xff] %v493
    %504 = vrot.lane.b32.xlu0 %v39, 72
    %v505 = vpop.permute.xlu0 %504
    %506 = vrot.lane.b32.xlu0 %v40, 72
    %v507 = vpop.permute.xlu0 %506
    %508 = vrot.lane.b32.xlu0 %v41, 72
    %v509 = vpop.permute.xlu0 %508
    %510 = vrot.lane.b32.xlu0 %v42, 72
    %v511 = vpop.permute.xlu0 %510
    %512 = vrot.lane.b32.xlu0 %v43, 72
    %v513 = vpop.permute.xlu0 %512
    %514 = vrot.lane.b32.xlu0 %v44, 72
    %v515 = vpop.permute.xlu0 %514
    %vm516 = vcmask 588800
    %v517 = vsel %vm516, %v505, %v507
    %v518 = vsel %vm516, %v507, %v509
    %v519 = vsel %vm516, %v509, %v511
    %v520 = vsel %vm516, %v511, %v513
    %v521 = vsel %vm516, %v513, %v515
    %527 = vst [vmem:[#allocation2 + $0x2a8] sm:$0xff] %v517
    %528 = vst [vmem:[#allocation2 + $0x2b0] sm:$0xff] %v518
    %529 = vst [vmem:[#allocation2 + $0x2b8] sm:$0xff] %v519
    %530 = vst [vmem:[#allocation2 + $0x2c0] sm:$0xff] %v520
    %531 = vst [vmem:[#allocation2 + $0x2c8] sm:$0xff] %v521
    %532 = vrot.lane.b32.xlu0 %v39, 71
    %v533 = vpop.permute.xlu0 %532
    %534 = vrot.lane.b32.xlu0 %v40, 71
    %v535 = vpop.permute.xlu0 %534
    %536 = vrot.lane.b32.xlu0 %v41, 71
    %v537 = vpop.permute.xlu0 %536
    %538 = vrot.lane.b32.xlu0 %v42, 71
    %v539 = vpop.permute.xlu0 %538
    %540 = vrot.lane.b32.xlu0 %v43, 71
    %v541 = vpop.permute.xlu0 %540
    %542 = vrot.lane.b32.xlu0 %v44, 71
    %v543 = vpop.permute.xlu0 %542
    %vm544 = vcmask 580608
    %v545 = vsel %vm544, %v533, %v535
    %v546 = vsel %vm544, %v535, %v537
    %v547 = vsel %vm544, %v537, %v539
    %v548 = vsel %vm544, %v539, %v541
    %v549 = vsel %vm544, %v541, %v543
    %555 = vst [vmem:[#allocation2 + $0x2d0] sm:$0xff] %v545
    %556 = vst [vmem:[#allocation2 + $0x2d8] sm:$0xff] %v546
    %557 = vst [vmem:[#allocation2 + $0x2e0] sm:$0xff] %v547
    %558 = vst [vmem:[#allocation2 + $0x2e8] sm:$0xff] %v548
    %559 = vst [vmem:[#allocation2 + $0x2f0] sm:$0xff] %v549
    %560 = vrot.lane.b32.xlu0 %v39, 70
    %v561 = vpop.permute.xlu0 %560
    %562 = vrot.lane.b32.xlu0 %v40, 70
    %v563 = vpop.permute.xlu0 %562
    %564 = vrot.lane.b32.xlu0 %v41, 70
    %v565 = vpop.permute.xlu0 %564
    %566 = vrot.lane.b32.xlu0 %v42, 70
    %v567 = vpop.permute.xlu0 %566
    %568 = vrot.lane.b32.xlu0 %v43, 70
    %v569 = vpop.permute.xlu0 %568
    %570 = vrot.lane.b32.xlu0 %v44, 70
    %v571 = vpop.permute.xlu0 %570
    %vm572 = vcmask 572416
    %v573 = vsel %vm572, %v561, %v563
    %v574 = vsel %vm572, %v563, %v565
    %v575 = vsel %vm572, %v565, %v567
    %v576 = vsel %vm572, %v567, %v569
    %v577 = vsel %vm572, %v569, %v571
    %583 = vst [vmem:[#allocation2 + $0x2f8] sm:$0xff] %v573
    %584 = vst [vmem:[#allocation2 + $0x300] sm:$0xff] %v574
    %585 = vst [vmem:[#allocation2 + $0x308] sm:$0xff] %v575
    %586 = vst [vmem:[#allocation2 + $0x310] sm:$0xff] %v576
    %587 = vst [vmem:[#allocation2 + $0x318] sm:$0xff] %v577
    %588 = vrot.lane.b32.xlu0 %v39, 56
    %v589 = vpop.permute.xlu0 %588
    %590 = vrot.lane.b32.xlu0 %v40, 56
    %v591 = vpop.permute.xlu0 %590
    %592 = vrot.lane.b32.xlu0 %v41, 56
    %v593 = vpop.permute.xlu0 %592
    %594 = vrot.lane.b32.xlu0 %v42, 56
    %v595 = vpop.permute.xlu0 %594
    %596 = vrot.lane.b32.xlu0 %v43, 56
    %v597 = vpop.permute.xlu0 %596
    %598 = vrot.lane.b32.xlu0 %v44, 56
    %v599 = vpop.permute.xlu0 %598
    %vm600 = vcmask 457728
    %v601 = vsel %vm600, %v589, %v591
    %v602 = vsel %vm600, %v591, %v593
    %v603 = vsel %vm600, %v593, %v595
    %v604 = vsel %vm600, %v595, %v597
    %v605 = vsel %vm600, %v597, %v599
    %611 = vst [vmem:[#allocation2 + $0x320] sm:$0xff] %v601
    %612 = vst [vmem:[#allocation2 + $0x328] sm:$0xff] %v602
    %613 = vst [vmem:[#allocation2 + $0x330] sm:$0xff] %v603
    %614 = vst [vmem:[#allocation2 + $0x338] sm:$0xff] %v604
    %615 = vst [vmem:[#allocation2 + $0x340] sm:$0xff] %v605
    %616 = vrot.lane.b32.xlu0 %v39, 55
    %v617 = vpop.permute.xlu0 %616
    %618 = vrot.lane.b32.xlu0 %v40, 55
    %v619 = vpop.permute.xlu0 %618
    %620 = vrot.lane.b32.xlu0 %v41, 55
    %v621 = vpop.permute.xlu0 %620
    %622 = vrot.lane.b32.xlu0 %v42, 55
    %v623 = vpop.permute.xlu0 %622
    %624 = vrot.lane.b32.xlu0 %v43, 55
    %v625 = vpop.permute.xlu0 %624
    %626 = vrot.lane.b32.xlu0 %v44, 55
    %v627 = vpop.permute.xlu0 %626
    %vm628 = vcmask 449536
    %v629 = vsel %vm628, %v617, %v619
    %v630 = vsel %vm628, %v619, %v621
    %v631 = vsel %vm628, %v621, %v623
    %v632 = vsel %vm628, %v623, %v625
    %v633 = vsel %vm628, %v625, %v627
    %639 = vst [vmem:[#allocation2 + $0x348] sm:$0xff] %v629
    %640 = vst [vmem:[#allocation2 + $0x350] sm:$0xff] %v630
    %641 = vst [vmem:[#allocation2 + $0x358] sm:$0xff] %v631
    %642 = vst [vmem:[#allocation2 + $0x360] sm:$0xff] %v632
    %643 = vst [vmem:[#allocation2 + $0x368] sm:$0xff] %v633
    %644 = vrot.lane.b32.xlu0 %v39, 54
    %v645 = vpop.permute.xlu0 %644
    %646 = vrot.lane.b32.xlu0 %v40, 54
    %v647 = vpop.permute.xlu0 %646
    %648 = vrot.lane.b32.xlu0 %v41, 54
    %v649 = vpop.permute.xlu0 %648
    %650 = vrot.lane.b32.xlu0 %v42, 54
    %v651 = vpop.permute.xlu0 %650
    %652 = vrot.lane.b32.xlu0 %v43, 54
    %v653 = vpop.permute.xlu0 %652
    %654 = vrot.lane.b32.xlu0 %v44, 54
    %v655 = vpop.permute.xlu0 %654
    %vm656 = vcmask 441344
    %v657 = vsel %vm656, %v645, %v647
    %v658 = vsel %vm656, %v647, %v649
    %v659 = vsel %vm656, %v649, %v651
    %v660 = vsel %vm656, %v651, %v653
    %v661 = vsel %vm656, %v653, %v655
    %667 = vst [vmem:[#allocation2 + $0x370] sm:$0xff] %v657
    %668 = vst [vmem:[#allocation2 + $0x378] sm:$0xff] %v658
    %669 = vst [vmem:[#allocation2 + $0x380] sm:$0xff] %v659
    %670 = vst [vmem:[#allocation2 + $0x388] sm:$0xff] %v660
    %671 = vst [vmem:[#allocation2 + $0x390] sm:$0xff] %v661
    %672 = vrot.lane.b32.xlu0 %v39, 53
    %v673 = vpop.permute.xlu0 %672
    %674 = vrot.lane.b32.xlu0 %v40, 53
    %v675 = vpop.permute.xlu0 %674
    %676 = vrot.lane.b32.xlu0 %v41, 53
    %v677 = vpop.permute.xlu0 %676
    %678 = vrot.lane.b32.xlu0 %v42, 53
    %v679 = vpop.permute.xlu0 %678
    %680 = vrot.lane.b32.xlu0 %v43, 53
    %v681 = vpop.permute.xlu0 %680
    %682 = vrot.lane.b32.xlu0 %v44, 53
    %v683 = vpop.permute.xlu0 %682
    %vm684 = vcmask 433152
    %v685 = vsel %vm684, %v673, %v675
    %v686 = vsel %vm684, %v675, %v677
    %v687 = vsel %vm684, %v677, %v679
    %v688 = vsel %vm684, %v679, %v681
    %v689 = vsel %vm684, %v681, %v683
    %695 = vst [vmem:[#allocation2 + $0x398] sm:$0xff] %v685
    %696 = vst [vmem:[#allocation2 + $0x3a0] sm:$0xff] %v686
    %697 = vst [vmem:[#allocation2 + $0x3a8] sm:$0xff] %v687
    %698 = vst [vmem:[#allocation2 + $0x3b0] sm:$0xff] %v688
    %699 = vst [vmem:[#allocation2 + $0x3b8] sm:$0xff] %v689
    %700 = vrot.lane.b32.xlu0 %v39, 52
    %v701 = vpop.permute.xlu0 %700
    %702 = vrot.lane.b32.xlu0 %v40, 52
    %v703 = vpop.permute.xlu0 %702
    %704 = vrot.lane.b32.xlu0 %v41, 52
    %v705 = vpop.permute.xlu0 %704
    %706 = vrot.lane.b32.xlu0 %v42, 52
    %v707 = vpop.permute.xlu0 %706
    %708 = vrot.lane.b32.xlu0 %v43, 52
    %v709 = vpop.permute.xlu0 %708
    %710 = vrot.lane.b32.xlu0 %v44, 52
    %v711 = vpop.permute.xlu0 %710
    %vm712 = vcmask 424960
    %v713 = vsel %vm712, %v701, %v703
    %v714 = vsel %vm712, %v703, %v705
    %v715 = vsel %vm712, %v705, %v707
    %v716 = vsel %vm712, %v707, %v709
    %v717 = vsel %vm712, %v709, %v711
    %723 = vst [vmem:[#allocation2 + $0x3c0] sm:$0xff] %v713
    %724 = vst [vmem:[#allocation2 + $0x3c8] sm:$0xff] %v714
    %725 = vst [vmem:[#allocation2 + $0x3d0] sm:$0xff] %v715
    %726 = vst [vmem:[#allocation2 + $0x3d8] sm:$0xff] %v716
    %727 = vst [vmem:[#allocation2 + $0x3e0] sm:$0xff] %v717
    %v728 = vld [vmem:[#allocation6] sm:$0xff]
    %v729 = vld [vmem:[#allocation6 + $0x8] sm:$0xff]
    %v730 = vld [vmem:[#allocation2] sm:$0xff]
    %v731 = vld [vmem:[#allocation2 + $0x8] sm:$0xff]
    %v732 = vld [vmem:[#allocation2 + $0x10] sm:$0xff]
    %v733 = vld [vmem:[#allocation2 + $0x18] sm:$0xff]
    %v734 = vld [vmem:[#allocation2 + $0x20] sm:$0xff]
    %v735 = vld [vmem:[#allocation2 + $0x28] sm:$0xff]
    %v736 = vld [vmem:[#allocation2 + $0x30] sm:$0xff]
    %v737 = vld [vmem:[#allocation2 + $0x38] sm:$0xff]
    %v738 = vld [vmem:[#allocation2 + $0x40] sm:$0xff]
    %v739 = vld [vmem:[#allocation2 + $0x48] sm:$0xff]
    %v740 = vld [vmem:[#allocation2 + $0x50] sm:$0xff]
    %v741 = vld [vmem:[#allocation2 + $0x58] sm:$0xff]
    %v742 = vld [vmem:[#allocation2 + $0x60] sm:$0xff]
    %v743 = vld [vmem:[#allocation2 + $0x68] sm:$0xff]
    %v744 = vld [vmem:[#allocation2 + $0x70] sm:$0xff]
    %v745 = vld [vmem:[#allocation2 + $0x78] sm:$0xff]
    %v746 = vld [vmem:[#allocation2 + $0x80] sm:$0xff]
    %v747 = vld [vmem:[#allocation2 + $0x88] sm:$0xff]
    %v748 = vld [vmem:[#allocation2 + $0x90] sm:$0xff]
    %v749 = vld [vmem:[#allocation2 + $0x98] sm:$0xff]
    %v750 = vld [vmem:[#allocation2 + $0xa0] sm:$0xff]
    %v751 = vld [vmem:[#allocation2 + $0xa8] sm:$0xff]
    %v752 = vld [vmem:[#allocation2 + $0xb0] sm:$0xff]
    %v753 = vld [vmem:[#allocation2 + $0xb8] sm:$0xff]
    %v754 = vld [vmem:[#allocation2 + $0xc0] sm:$0xff]
    %v755 = vld [vmem:[#allocation2 + $0xc8] sm:$0xff]
    %v756 = vld [vmem:[#allocation2 + $0xd0] sm:$0xff]
    %v757 = vld [vmem:[#allocation2 + $0xd8] sm:$0xff]
    %v758 = vld [vmem:[#allocation2 + $0xe0] sm:$0xff]
    %v759 = vld [vmem:[#allocation2 + $0xe8] sm:$0xff]
    %v760 = vld [vmem:[#allocation2 + $0xf0] sm:$0xff]
    %v761 = vld [vmem:[#allocation2 + $0xf8] sm:$0xff]
    %v762 = vld [vmem:[#allocation2 + $0x100] sm:$0xff]
    %v763 = vld [vmem:[#allocation2 + $0x108] sm:$0xff]
    %v764 = vld [vmem:[#allocation2 + $0x110] sm:$0xff]
    %v765 = vld [vmem:[#allocation2 + $0x118] sm:$0xff]
    %v766 = vld [vmem:[#allocation2 + $0x120] sm:$0xff]
    %v767 = vld [vmem:[#allocation2 + $0x128] sm:$0xff]
    %v768 = vld [vmem:[#allocation2 + $0x130] sm:$0xff]
    %v769 = vld [vmem:[#allocation2 + $0x138] sm:$0xff]
    %v770 = vld [vmem:[#allocation2 + $0x140] sm:$0xff]
    %v771 = vld [vmem:[#allocation2 + $0x148] sm:$0xff]
    %v772 = vld [vmem:[#allocation2 + $0x150] sm:$0xff]
    %v773 = vld [vmem:[#allocation2 + $0x158] sm:$0xff]
    %v774 = vld [vmem:[#allocation2 + $0x160] sm:$0xff]
    %v775 = vld [vmem:[#allocation2 + $0x168] sm:$0xff]
    %v776 = vld [vmem:[#allocation2 + $0x170] sm:$0xff]
    %v777 = vld [vmem:[#allocation2 + $0x178] sm:$0xff]
    %v778 = vld [vmem:[#allocation2 + $0x180] sm:$0xff]
    %v779 = vld [vmem:[#allocation2 + $0x188] sm:$0xff]
    %v780 = vld [vmem:[#allocation2 + $0x190] sm:$0xff]
    %v781 = vld [vmem:[#allocation2 + $0x198] sm:$0xff]
    %v782 = vld [vmem:[#allocation2 + $0x1a0] sm:$0xff]
    %v783 = vld [vmem:[#allocation2 + $0x1a8] sm:$0xff]
    %v784 = vld [vmem:[#allocation2 + $0x1b0] sm:$0xff]
    %v785 = vld [vmem:[#allocation2 + $0x1b8] sm:$0xff]
    %v786 = vld [vmem:[#allocation2 + $0x1c0] sm:$0xff]
    %v787 = vld [vmem:[#allocation2 + $0x1c8] sm:$0xff]
    %v788 = vld [vmem:[#allocation2 + $0x1d0] sm:$0xff]
    %v789 = vld [vmem:[#allocation2 + $0x1d8] sm:$0xff]
    %v790 = vld [vmem:[#allocation2 + $0x1e0] sm:$0xff]
    %v791 = vld [vmem:[#allocation2 + $0x1e8] sm:$0xff]
    %v792 = vld [vmem:[#allocation2 + $0x1f0] sm:$0xff]
    %v793 = vld [vmem:[#allocation2 + $0x1f8] sm:$0xff]
    %v794 = vld [vmem:[#allocation2 + $0x200] sm:$0xff]
    %v795 = vld [vmem:[#allocation2 + $0x208] sm:$0xff]
    %v796 = vld [vmem:[#allocation2 + $0x210] sm:$0xff]
    %v797 = vld [vmem:[#allocation2 + $0x218] sm:$0xff]
    %v798 = vld [vmem:[#allocation2 + $0x220] sm:$0xff]
    %v799 = vld [vmem:[#allocation2 + $0x228] sm:$0xff]
    %v800 = vld [vmem:[#allocation2 + $0x230] sm:$0xff]
    %v801 = vld [vmem:[#allocation2 + $0x238] sm:$0xff]
    %v802 = vld [vmem:[#allocation2 + $0x240] sm:$0xff]
    %v803 = vld [vmem:[#allocation2 + $0x248] sm:$0xff]
    %v804 = vld [vmem:[#allocation2 + $0x250] sm:$0xff]
    %v805 = vld [vmem:[#allocation2 + $0x258] sm:$0xff]
    %v806 = vld [vmem:[#allocation2 + $0x260] sm:$0xff]
    %v807 = vld [vmem:[#allocation2 + $0x268] sm:$0xff]
    %v808 = vld [vmem:[#allocation2 + $0x270] sm:$0xff]
    %v809 = vld [vmem:[#allocation2 + $0x278] sm:$0xff]
    %v810 = vld [vmem:[#allocation2 + $0x280] sm:$0xff]
    %v811 = vld [vmem:[#allocation2 + $0x288] sm:$0xff]
    %v812 = vld [vmem:[#allocation2 + $0x290] sm:$0xff]
    %v813 = vld [vmem:[#allocation2 + $0x298] sm:$0xff]
    %v814 = vld [vmem:[#allocation2 + $0x2a0] sm:$0xff]
    %v815 = vld [vmem:[#allocation2 + $0x2a8] sm:$0xff]
    %v816 = vld [vmem:[#allocation2 + $0x2b0] sm:$0xff]
    %v817 = vld [vmem:[#allocation2 + $0x2b8] sm:$0xff]
    %v818 = vld [vmem:[#allocation2 + $0x2c0] sm:$0xff]
    %v819 = vld [vmem:[#allocation2 + $0x2c8] sm:$0xff]
    %v820 = vld [vmem:[#allocation2 + $0x2d0] sm:$0xff]
    %v821 = vld [vmem:[#allocation2 + $0x2d8] sm:$0xff]
    %v822 = vld [vmem:[#allocation2 + $0x2e0] sm:$0xff]
    %v823 = vld [vmem:[#allocation2 + $0x2e8] sm:$0xff]
    %v824 = vld [vmem:[#allocation2 + $0x2f0] sm:$0xff]
    %v825 = vld [vmem:[#allocation2 + $0x2f8] sm:$0xff]
    %v826 = vld [vmem:[#allocation2 + $0x300] sm:$0xff]
    %v827 = vld [vmem:[#allocation2 + $0x308] sm:$0xff]
    %v828 = vld [vmem:[#allocation2 + $0x310] sm:$0xff]
    %v829 = vld [vmem:[#allocation2 + $0x318] sm:$0xff]
    %v830 = vld [vmem:[#allocation2 + $0x320] sm:$0xff]
    %v831 = vld [vmem:[#allocation2 + $0x328] sm:$0xff]
    %v832 = vld [vmem:[#allocation2 + $0x330] sm:$0xff]
    %v833 = vld [vmem:[#allocation2 + $0x338] sm:$0xff]
    %v834 = vld [vmem:[#allocation2 + $0x340] sm:$0xff]
    %v835 = vld [vmem:[#allocation2 + $0x348] sm:$0xff]
    %v836 = vld [vmem:[#allocation2 + $0x350] sm:$0xff]
    %v837 = vld [vmem:[#allocation2 + $0x358] sm:$0xff]
    %v838 = vld [vmem:[#allocation2 + $0x360] sm:$0xff]
    %v839 = vld [vmem:[#allocation2 + $0x368] sm:$0xff]
    %v840 = vld [vmem:[#allocation2 + $0x370] sm:$0xff]
    %v841 = vld [vmem:[#allocation2 + $0x378] sm:$0xff]
    %v842 = vld [vmem:[#allocation2 + $0x380] sm:$0xff]
    %v843 = vld [vmem:[#allocation2 + $0x388] sm:$0xff]
    %v844 = vld [vmem:[#allocation2 + $0x390] sm:$0xff]
    %v845 = vld [vmem:[#allocation2 + $0x398] sm:$0xff]
    %v846 = vld [vmem:[#allocation2 + $0x3a0] sm:$0xff]
    %v847 = vld [vmem:[#allocation2 + $0x3a8] sm:$0xff]
    %v848 = vld [vmem:[#allocation2 + $0x3b0] sm:$0xff]
    %v849 = vld [vmem:[#allocation2 + $0x3b8] sm:$0xff]
    %v850 = vld [vmem:[#allocation2 + $0x3c0] sm:$0xff]
    %v851 = vld [vmem:[#allocation2 + $0x3c8] sm:$0xff]
    %v852 = vld [vmem:[#allocation2 + $0x3d0] sm:$0xff]
    %v853 = vld [vmem:[#allocation2 + $0x3d8] sm:$0xff]
    %v854 = vld [vmem:[#allocation2 + $0x3e0] sm:$0xff]
    %v856 = vsel %vm516, %v729, 0
    %858 = vmatprep.subr.mxu0 %v806
    %859 = vmatpush1.msra.mxu0 %v805
    %860 = vmatprep.subr.mxu0 %v801
    %861 = vmatpush1.msra.mxu0 %v800
    %862 = vmatprep.subr.mxu0 %v796
    %863 = vmatpush1.msra.mxu0 %v795
    %864 = vmatprep.subr.mxu0 %v791
    %865 = vmatpush1.msra.mxu0 %v790
    %866 = vmatprep.subr.mxu0 %v786
    %867 = vmatpush1.msra.mxu0 %v785
    %868 = vmatprep.subr.mxu0 %v781
    %869 = vmatpush1.msra.mxu0 %v780
    %870 = vmatprep.subr.mxu0 %v776
    %871 = vmatpush1.msra.mxu0 %v775
    %872 = vmatprep.subr.mxu0 %v771
    %873 = vmatpush1.msra.mxu0 %v770
    %874 = vmatprep.subr.mxu0 %v766
    %875 = vmatpush1.msra.mxu0 %v765
    %876 = vmatprep.subr.mxu0 %v761
    %877 = vmatpush1.msra.mxu0 %v760
    %878 = vmatprep.subr.mxu0 %v756
    %879 = vmatpush1.msra.mxu0 %v755
    %880 = vmatprep.subr.mxu0 %v751
    %881 = vmatpush1.msra.mxu0 %v750
    %882 = vmatprep.subr.mxu0 %v746
    %883 = vmatpush1.msra.mxu0 %v745
    %884 = vmatprep.subr.mxu0 %v741
    %885 = vmatpush1.msra.mxu0 %v740
    %886 = vmatprep.subr.mxu0 %v736
    %887 = vmatpush1.msra.mxu0 %v735
    %888 = vmatprep.subr.mxu0 %v731
    %889 = vmatpush1.msra.mxu0 %v730
    %890 = vmatprep.subr.mxu0 0.0
    %891 = vmatpush2.msra.mxu0 0.0
    %892 = vmatprep.subr.mxu0 0.0
    %893 = vmatpush2.msra.mxu0 0.0
    %894 = vmatprep.subr.mxu0 0.0
    %895 = vmatpush2.msra.mxu0 0.0
    %896 = vmatprep.subr.mxu0 0.0
    %897 = vmatpush2.msra.mxu0 0.0
    %898 = vmatprep.subr.mxu0 0.0
    %899 = vmatpush2.msra.mxu0 0.0
    %900 = vmatprep.subr.mxu0 0.0
    %901 = vmatpush2.msra.mxu0 0.0
    %902 = vmatprep.subr.mxu0 0.0
    %903 = vmatpush2.msra.mxu0 0.0
    %904 = vmatprep.subr.mxu0 %v851
    %905 = vmatpush2.msra.mxu0 %v850
    %906 = vmatprep.subr.mxu0 %v846
    %907 = vmatpush2.msra.mxu0 %v845
    %908 = vmatprep.subr.mxu0 %v841
    %909 = vmatpush2.msra.mxu0 %v840
    %910 = vmatprep.subr.mxu0 %v836
    %911 = vmatpush2.msra.mxu0 %v835
    %912 = vmatprep.subr.mxu0 %v831
    %913 = vmatpush2.msra.mxu0 %v830
    %914 = vmatprep.subr.mxu0 %v826
    %915 = vmatpush2.msra.mxu0 %v825
    %916 = vmatprep.subr.mxu0 %v821
    %917 = vmatpush2.msra.mxu0 %v820
    %918 = vmatprep.subr.mxu0 %v816
    %919 = vmatpush2.msra.mxu0 %v815
    %920 = vmatprep.subr.mxu0 %v811
    %921 = vmatpush2.msra.mxu0 %v810
    %922 = vmatprep.mubr.f32.mxu0 %v856
    %923 = vmatmul.mubr.f32.gmra.mxu0 %v728
    %v924 = vpop.f32.mrf.mxu0
    %v925 = vadd.f32 0.0, %v924
    %v926 = vpop.f32.mrf.mxu0
    %v927 = vadd.f32 0.0, %v926
    %928 = vdwg.mxu0
    %929 = vmatprep.subr.mxu0 %v808
    %930 = vmatpush1.msra.mxu0 %v807
    %931 = vmatprep.subr.mxu0 %v803
    %932 = vmatpush1.msra.mxu0 %v802
    %933 = vmatprep.subr.mxu0 %v798
    %934 = vmatpush1.msra.mxu0 %v797
    %935 = vmatprep.subr.mxu0 %v793
    %936 = vmatpush1.msra.mxu0 %v792
    %937 = vmatprep.subr.mxu0 %v788
    %938 = vmatpush1.msra.mxu0 %v787
    %939 = vmatprep.subr.mxu0 %v783
    %940 = vmatpush1.msra.mxu0 %v782
    %941 = vmatprep.subr.mxu0 %v778
    %942 = vmatpush1.msra.mxu0 %v777
    %943 = vmatprep.subr.mxu0 %v773
    %944 = vmatpush1.msra.mxu0 %v772
    %945 = vmatprep.subr.mxu0 %v768
    %946 = vmatpush1.msra.mxu0 %v767
    %947 = vmatprep.subr.mxu0 %v763
    %948 = vmatpush1.msra.mxu0 %v762
    %949 = vmatprep.subr.mxu0 %v758
    %950 = vmatpush1.msra.mxu0 %v757
    %951 = vmatprep.subr.mxu0 %v753
    %952 = vmatpush1.msra.mxu0 %v752
    %953 = vmatprep.subr.mxu0 %v748
    %954 = vmatpush1.msra.mxu0 %v747
    %955 = vmatprep.subr.mxu0 %v743
    %956 = vmatpush1.msra.mxu0 %v742
    %957 = vmatprep.subr.mxu0 %v738
    %958 = vmatpush1.msra.mxu0 %v737
    %959 = vmatprep.subr.mxu0 %v733
    %960 = vmatpush1.msra.mxu0 %v732
    %961 = vmatprep.subr.mxu0 0.0
    %962 = vmatpush2.msra.mxu0 0.0
    %963 = vmatprep.subr.mxu0 0.0
    %964 = vmatpush2.msra.mxu0 0.0
    %965 = vmatprep.subr.mxu0 0.0
    %966 = vmatpush2.msra.mxu0 0.0
    %967 = vmatprep.subr.mxu0 0.0
    %968 = vmatpush2.msra.mxu0 0.0
    %969 = vmatprep.subr.mxu0 0.0
    %970 = vmatpush2.msra.mxu0 0.0
    %971 = vmatprep.subr.mxu0 0.0
    %972 = vmatpush2.msra.mxu0 0.0
    %973 = vmatprep.subr.mxu0 0.0
    %974 = vmatpush2.msra.mxu0 0.0
    %975 = vmatprep.subr.mxu0 %v853
    %976 = vmatpush2.msra.mxu0 %v852
    %977 = vmatprep.subr.mxu0 %v848
    %978 = vmatpush2.msra.mxu0 %v847
    %979 = vmatprep.subr.mxu0 %v843
    %980 = vmatpush2.msra.mxu0 %v842
    %981 = vmatprep.subr.mxu0 %v838
    %982 = vmatpush2.msra.mxu0 %v837
    %983 = vmatprep.subr.mxu0 %v833
    %984 = vmatpush2.msra.mxu0 %v832
    %985 = vmatprep.subr.mxu0 %v828
    %986 = vmatpush2.msra.mxu0 %v827
    %987 = vmatprep.subr.mxu0 %v823
    %988 = vmatpush2.msra.mxu0 %v822
    %989 = vmatprep.subr.mxu0 %v818
    %990 = vmatpush2.msra.mxu0 %v817
    %991 = vmatprep.subr.mxu0 %v813
    %992 = vmatpush2.msra.mxu0 %v812
    %993 = vmatprep.mubr.f32.mxu0 %v856
    %994 = vmatmul.mubr.f32.gmra.mxu0 %v728
    %v995 = vpop.f32.mrf.mxu0
    %v996 = vadd.f32 0.0, %v995
    %v997 = vpop.f32.mrf.mxu0
    %v998 = vadd.f32 0.0, %v997
    %999 = vdwg.mxu0
    %1000 = vmatprep.subr.mxu0 0.0
    %1001 = vmatpush1.msra.mxu0 %v809
    %1002 = vmatprep.subr.mxu0 0.0
    %1003 = vmatpush1.msra.mxu0 %v804
    %1004 = vmatprep.subr.mxu0 0.0
    %1005 = vmatpush1.msra.mxu0 %v799
    %1006 = vmatprep.subr.mxu0 0.0
    %1007 = vmatpush1.msra.mxu0 %v794
    %1008 = vmatprep.subr.mxu0 0.0
    %1009 = vmatpush1.msra.mxu0 %v789
    %1010 = vmatprep.subr.mxu0 0.0
    %1011 = vmatpush1.msra.mxu0 %v784
    %1012 = vmatprep.subr.mxu0 0.0
    %1013 = vmatpush1.msra.mxu0 %v779
    %1014 = vmatprep.subr.mxu0 0.0
    %1015 = vmatpush1.msra.mxu0 %v774
    %1016 = vmatprep.subr.mxu0 0.0
    %1017 = vmatpush1.msra.mxu0 %v769
    %1018 = vmatprep.subr.mxu0 0.0
    %1019 = vmatpush1.msra.mxu0 %v764
    %1020 = vmatprep.subr.mxu0 0.0
    %1021 = vmatpush1.msra.mxu0 %v759
    %1022 = vmatprep.subr.mxu0 0.0
    %1023 = vmatpush1.msra.mxu0 %v754
    %1024 = vmatprep.subr.mxu0 0.0
    %1025 = vmatpush1.msra.mxu0 %v749
    %1026 = vmatprep.subr.mxu0 0.0
    %1027 = vmatpush1.msra.mxu0 %v744
    %1028 = vmatprep.subr.mxu0 0.0
    %1029 = vmatpush1.msra.mxu0 %v739
    %1030 = vmatprep.subr.mxu0 0.0
    %1031 = vmatpush1.msra.mxu0 %v734
    %1032 = vmatprep.subr.mxu0 0.0
    %1033 = vmatpush2.msra.mxu0 0.0
    %1034 = vmatprep.subr.mxu0 0.0
    %1035 = vmatpush2.msra.mxu0 0.0
    %1036 = vmatprep.subr.mxu0 0.0
    %1037 = vmatpush2.msra.mxu0 0.0
    %1038 = vmatprep.subr.mxu0 0.0
    %1039 = vmatpush2.msra.mxu0 0.0
    %1040 = vmatprep.subr.mxu0 0.0
    %1041 = vmatpush2.msra.mxu0 0.0
    %1042 = vmatprep.subr.mxu0 0.0
    %1043 = vmatpush2.msra.mxu0 0.0
    %1044 = vmatprep.subr.mxu0 0.0
    %1045 = vmatpush2.msra.mxu0 0.0
    %1046 = vmatprep.subr.mxu0 0.0
    %1047 = vmatpush2.msra.mxu0 %v854
    %1048 = vmatprep.subr.mxu0 0.0
    %1049 = vmatpush2.msra.mxu0 %v849
    %1050 = vmatprep.subr.mxu0 0.0
    %1051 = vmatpush2.msra.mxu0 %v844
    %1052 = vmatprep.subr.mxu0 0.0
    %1053 = vmatpush2.msra.mxu0 %v839
    %1054 = vmatprep.subr.mxu0 0.0
    %1055 = vmatpush2.msra.mxu0 %v834
    %1056 = vmatprep.subr.mxu0 0.0
    %1057 = vmatpush2.msra.mxu0 %v829
    %1058 = vmatprep.subr.mxu0 0.0
    %1059 = vmatpush2.msra.mxu0 %v824
    %1060 = vmatprep.subr.mxu0 0.0
    %1061 = vmatpush2.msra.mxu0 %v819
    %1062 = vmatprep.subr.mxu0 0.0
    %1063 = vmatpush2.msra.mxu0 %v814
    %1064 = vmatprep.mubr.f32.mxu0 %v856
    %1065 = vmatmul.mubr.f32.gmra.mxu0 %v728
    %v1066 = vpop.f32.mrf.mxu0
    %v1067 = vadd.f32 0.0, %v1066
    %v1068 = vpop.f32.mrf.mxu0
    %1069 = vdwg.mxu0
    %v1070 = vlaneseq
    %v1071 = vand.u32 %v1070, 127
    %v1072 = vadd.s32 %v1071, 128
    %v1073 = vadd.s32 %v1071, 256
    %v1074 = vadd.s32 %v1071, 384
    %v1075 = vadd.s32 %v1071, 512
    %v1076 = vcvt.s32.f32 %v1071
    %v1077 = vcvt.s32.f32 %v1072
    %v1078 = vcvt.s32.f32 %v1073
    %v1079 = vcvt.s32.f32 %v1074
    %v1080 = vcvt.s32.f32 %v1075
    %v1081 = vrcp.pop 324.0
    %v1082 = vmul.f32 %v1076, %v1081
    %v1083 = vmul.f32 %v1077, %v1081
    %v1084 = vmul.f32 %v1078, %v1081
    %v1085 = vmul.f32 %v1079, %v1081
    %v1086 = vmul.f32 %v1080, %v1081
    %v1087 = vfloor.f32 %v1082
    %v1088 = vfloor.f32 %v1083
    %v1089 = vfloor.f32 %v1084
    %v1090 = vfloor.f32 %v1085
    %v1091 = vfloor.f32 %v1086
    %v1092 = vmul.f32 %v1087, 324.0
    %v1093 = vmul.f32 %v1088, 324.0
    %v1094 = vmul.f32 %v1089, 324.0
    %v1095 = vmul.f32 %v1090, 324.0
    %v1096 = vmul.f32 %v1091, 324.0
    %v1097 = vsub.f32 %v1076, %v1092
    %v1098 = vsub.f32 %v1077, %v1093
    %v1099 = vsub.f32 %v1078, %v1094
    %v1100 = vsub.f32 %v1079, %v1095
    %v1101 = vsub.f32 %v1080, %v1096
    %v1102 = vrcp.pop 18.0
    %v1103 = vmul.f32 %v1097, %v1102
    %v1104 = vmul.f32 %v1098, %v1102
    %v1105 = vmul.f32 %v1099, %v1102
    %v1106 = vmul.f32 %v1100, %v1102
    %v1107 = vmul.f32 %v1101, %v1102
    %v1108 = vfloor.f32 %v1103
    %v1109 = vfloor.f32 %v1104
    %v1110 = vfloor.f32 %v1105
    %v1111 = vfloor.f32 %v1106
    %v1112 = vfloor.f32 %v1107
    %v1113 = vmul.f32 %v1108, 18.0
    %v1114 = vmul.f32 %v1109, 18.0
    %v1115 = vmul.f32 %v1110, 18.0
    %v1116 = vmul.f32 %v1111, 18.0
    %v1117 = vmul.f32 %v1112, 18.0
    %v1118 = vsub.f32 %v1097, %v1113
    %v1119 = vsub.f32 %v1098, %v1114
    %v1120 = vsub.f32 %v1099, %v1115
    %v1121 = vsub.f32 %v1100, %v1116
    %v1122 = vsub.f32 %v1101, %v1117
    %vm1123 = vcmp.lt.f32.partialorder %v1076, 648.0
    %vm1124 = vcmp.lt.f32.partialorder %v1077, 648.0
    %vm1125 = vcmp.lt.f32.partialorder %v1078, 648.0
    %vm1126 = vcmp.lt.f32.partialorder %v1079, 648.0
    %vm1127 = vcmp.lt.f32.partialorder %v1080, 648.0
    %vm1128 = vcmp.lt.f32.partialorder %v1097, 252.0
    %vm1129 = vcmp.lt.f32.partialorder %v1098, 252.0
    %vm1130 = vcmp.lt.f32.partialorder %v1099, 252.0
    %vm1131 = vcmp.lt.f32.partialorder %v1100, 252.0
    %vm1132 = vcmp.lt.f32.partialorder %v1101, 252.0
    %vm1133 = vmand %vm1123, %vm1128
    %vm1134 = vmand %vm1124, %vm1129
    %vm1135 = vmand %vm1125, %vm1130
    %vm1136 = vmand %vm1126, %vm1131
    %vm1137 = vmand %vm1127, %vm1132
    %vm1138 = vcmp.lt.f32.partialorder %v1118, 14.0
    %vm1139 = vcmp.lt.f32.partialorder %v1119, 14.0
    %vm1140 = vcmp.lt.f32.partialorder %v1120, 14.0
    %vm1141 = vcmp.lt.f32.partialorder %v1121, 14.0
    %vm1142 = vcmp.lt.f32.partialorder %v1122, 14.0
    %vm1143 = vmand %vm1133, %vm1138
    %vm1144 = vmand %vm1134, %vm1139
    %vm1145 = vmand %vm1135, %vm1140
    %vm1146 = vmand %vm1136, %vm1141
    %vm1147 = vmand %vm1137, %vm1142
    %v1148 = vsel %vm1143, 1, 0
    %v1149 = vsel %vm1144, 1, 0
    %v1150 = vsel %vm1145, 1, 0
    %v1151 = vsel %vm1146, 1, 0
    %v1152 = vsel %vm1147, 1, 0
    %vm1153 = vcmp.eq.s32.totalorder %v1148, 1
    %vm1154 = vcmp.eq.s32.totalorder %v1149, 1
    %vm1155 = vcmp.eq.s32.totalorder %v1150, 1
    %vm1156 = vcmp.eq.s32.totalorder %v1151, 1
    %vm1157 = vcmp.eq.s32.totalorder %v1152, 1
    %v1158 = vsel %vm1153, %v925, 0.0
    %v1159 = vsel %vm1154, %v927, 0.0
    %v1160 = vsel %vm1155, %v996, 0.0
    %v1161 = vsel %vm1156, %v998, 0.0
    %v1162 = vsel %vm1157, %v1067, 0.0
    %v1163 = vadd.f32 %v1158, %v1159
    %v1164 = vadd.f32 %v1163, %v1160
    %v1165 = vadd.f32 %v1164, %v1161
    %v1166 = vadd.f32 %v1165, %v1162
    %1167 = vadd.xlane.f32.xlu0 %v1166
    %v1168 = vpop.xlane.xlu0 %1167
    %v1169 = vmul.f32 %v1168, 0.0025510204
    %v1170 = vsub.f32 %v925, %v1169
    %v1171 = vsub.f32 %v927, %v1169
    %v1172 = vsub.f32 %v996, %v1169
    %v1173 = vsub.f32 %v998, %v1169
    %v1174 = vsub.f32 %v1067, %v1169
    %v1175 = vsel %vm1153, %v1170, 0.0
    %v1176 = vsel %vm1154, %v1171, 0.0
    %v1177 = vsel %vm1155, %v1172, 0.0
    %v1178 = vsel %vm1156, %v1173, 0.0
    %v1179 = vsel %vm1157, %v1174, 0.0
    %v1180 = vmul.f32 %v1175, %v1175
    %v1181 = vmul.f32 %v1176, %v1176
    %v1182 = vmul.f32 %v1177, %v1177
    %v1183 = vmul.f32 %v1178, %v1178
    %v1184 = vmul.f32 %v1179, %v1179
    %v1185 = vadd.f32 %v1180, %v1181
    %v1186 = vadd.f32 %v1185, %v1182
    %v1187 = vadd.f32 %v1186, %v1183
    %v1188 = vadd.f32 %v1187, %v1184
    %1189 = vadd.xlane.f32.xlu0 %v1188
    %v1190 = vpop.xlane.xlu0 %1189
    %v1191 = vmul.f32 %v1190, 0.0025510204
    %v1192 = vadd.f32 %v1191, 1e-05
    %v1193 = vrsqrt.pop %v1192
    %v1194 = vld [vmem:[%s2] sm:$0xff]
    %v1195 = vmul.f32 %v1193, %v1194
    %v1196 = vmul.f32 %v1169, %v1195
    %1198 = vrot.lane.b32.xlu0 %v1196, 1
    %v1199 = vpop.permute.xlu0 %1198
    %v1201 = vsub.f32 %v1194, %v1199
    %1203 = vset.pattern.permute.xlu0 0
    %1204 = vperm.xlu0 %1203, %v1195
    %v1205 = vpop.permute.xlu0 %1204
    %v1207 = vmul.f32 %v925, %v1205
    %v1208 = vmul.f32 %v927, %v1205
    %v1209 = vmul.f32 %v996, %v1205
    %v1210 = vmul.f32 %v998, %v1205
    %v1211 = vmul.f32 %v1067, %v1205
    %1213 = vset.pattern.permute.xlu0 1
    %1214 = vperm.xlu0 %1213, %v1201
    %v1215 = vpop.permute.xlu0 %1214
    %v1217 = vadd.f32 %v1207, %v1215
    %v1218 = vadd.f32 %v1208, %v1215
    %v1219 = vadd.f32 %v1209, %v1215
    %v1220 = vadd.f32 %v1210, %v1215
    %v1221 = vadd.f32 %v1211, %v1215
    %v1222 = vmax.f32 %v1217, 0.0
    %v1223 = vmax.f32 %v1218, 0.0
    %v1224 = vmax.f32 %v1219, 0.0
    %v1225 = vmax.f32 %v1220, 0.0
    %v1226 = vmax.f32 %v1221, 0.0
    %1227 = vst [vmem:[#allocation8] sm:$0xff] %v1222
    %1228 = vst [vmem:[#allocation8 + $0x8] sm:$0xff] %v1223
    %1229 = vst [vmem:[#allocation8 + $0x10] sm:$0xff] %v1224
    %1230 = vst [vmem:[#allocation8 + $0x18] sm:$0xff] %v1225
    %1231 = vst [vmem:[#allocation8 + $0x20] sm:$0xff] %v1226
    // Predicated region
    $region22: #{tpu_custom_call.1} parent=1 // pred_check
      _
    $region23: #{tpu_custom_call.1} parent=1 // pred_check_branch
      %1233 = sbr.rel (0) target = $region25
    $region24: #{tpu_custom_call.1} parent=1 // pred_region
      %s1235 = ssub.s32 640, 640
      %1236 = vsyncadd [#allocation5], %s1235
      %s1238 = sshll.u32 [#allocation8], 4
      %s1239 = int_to_ptr.vmem [resolvable:$true] %s1238
      %1241 = dma.vmem_to_hbm [thread:$0]  %s1239, 640, %s3, [#allocation5]
    $region25: #{tpu_custom_call.1} parent=1 // pred_fallthru
      _
    // Predicated region
    $region26: #{tpu_custom_call.1} parent=1 // pred_check
      _
    $region27: #{tpu_custom_call.1} parent=1 // pred_check_branch
      %1243 = sbr.rel (0) target = $region29
    $region28: #{tpu_custom_call.1} parent=1 // pred_region
      %1244 = dma.done [#allocation5], 640
    $region29: #{tpu_custom_call.1} parent=1 // pred_fallthru
      _
    %1245 = vsyncpa [#allocation4], 1
    %1246 = vsyncpa [#allocation7], 1
    %1247 = vsyncpa [#allocation5], 1

</llo_original>
